<compile_context>
chip_gen: v7x
topology: tpu7x:2x2x1
jax: 0.10.0
libtpu: 0.0.40
codegen_flags: <defaults>
</compile_context>

<pallas_src>
import numpy as np
import jax
import jax.numpy as jnp
from jax.experimental import pallas as pl
from jax.experimental.pallas import tpu as pltpu

N = 16           # max nodes per AST graph (padded)
D = 128          # GNN hidden / graph-embedding dim
NUM_NT = 10      # number of nonterminal symbols
GROUP = 16       # graphs per grid step
M = GROUP * N    # 256 matmul rows per step (matches v6e/v7x MXU width)
MIN_GROUPS = 2   # keep >= 2 grid steps so "parallel" can use both TCs (v7x)


def _gnn_kernel(a_ref, x_ref, p_ref, w1_ref, b1_ref, w2_ref, b2_ref, o_ref):
    a = a_ref[...]                        # (M, M)  bf16 block-diagonal adjacency
    h = x_ref[...]                        # (M, D)  bf16 initial node embeddings

    # GNN layer 1: H1 = relu((A_bd @ H0) @ W1 + b1)  -- two full-K MXU pushes.
    m = jnp.dot(a, h, preferred_element_type=jnp.float32)
    h = jnp.maximum(
        jnp.dot(m.astype(jnp.bfloat16), w1_ref[...],
                preferred_element_type=jnp.float32) + b1_ref[...],
        0.0)

    # GNN layer 2: H2 = relu((A_bd @ H1) @ W2 + b2)
    m = jnp.dot(a, h.astype(jnp.bfloat16), preferred_element_type=jnp.float32)
    h = jnp.maximum(
        jnp.dot(m.astype(jnp.bfloat16), w2_ref[...],
                preferred_element_type=jnp.float32) + b2_ref[...],
        0.0)                               # (M, D) f32

    # Mean-pool over valid nodes of each graph, fused as one MXU matmul:
    # (GROUP, M) block-diagonal pooling weights (f32) @ (M, D) -> (GROUP, D).
    # P rows are exactly zero on padded/invalid node columns.
    o_ref[...] = jnp.dot(p_ref[...], h, preferred_element_type=jnp.float32)


def term_encoder_forward(nnodes, adj, feats, w1, b1, w2, b2):
    """nnodes: (B,) int32; adj: (B,N,N) f32; feats: (B,N,D) f32 -> (B,D) f32."""
    B = adj.shape[0]
    num_groups = max(MIN_GROUPS, (B + GROUP - 1) // GROUP)
    b_pad = num_groups * GROUP
    pad = b_pad - B
    if pad:
        adj = jnp.concatenate([adj, jnp.zeros((pad, N, N), adj.dtype)], axis=0)
        feats = jnp.concatenate([feats, jnp.zeros((pad, N, D), feats.dtype)], axis=0)
        nnodes = jnp.concatenate([nnodes, jnp.zeros((pad,), nnodes.dtype)], axis=0)

    eye = jnp.eye(GROUP, dtype=jnp.float32)

    # Block-diagonal adjacency per group, flattened to 2D (num_groups*M, M).
    adj_g = adj.reshape(num_groups, GROUP, N, N).astype(jnp.float32)
    a_bd = adj_g[:, :, :, None, :] * eye[None, :, None, :, None]   # (K,G,N,G,N)
    a_bd = a_bd.reshape(num_groups * M, M).astype(jnp.bfloat16)

    # Node features flattened to (num_groups*M, D), bf16 MXU operand.
    x = feats.reshape(num_groups * M, D).astype(jnp.bfloat16)

    # Pooling weights: row b has 1/n_b on its own valid-node columns
    # (offset (b % GROUP) * N inside the tile), exact zeros elsewhere.
    denom = jnp.maximum(nnodes, 1).astype(jnp.float32)
    per_node = jnp.where(jnp.arange(N)[None, :] < nnodes[:, None],
                         1.0 / denom[:, None], 0.0)                 # (b_pad, N)
    per_node_g = per_node.reshape(num_groups, GROUP, N)
    pool_w = (per_node_g[:, :, None, :] * eye[None, :, :, None]).reshape(b_pad, M)

    w1b = w1.astype(jnp.bfloat16)
    w2b = w2.astype(jnp.bfloat16)
    b1f = b1.astype(jnp.float32)
    b2f = b2.astype(jnp.float32)

    out = pl.pallas_call(
        _gnn_kernel,
        out_shape=jax.ShapeDtypeStruct((b_pad, D), jnp.float32),
        grid_spec=pltpu.PrefetchScalarGridSpec(
            num_scalar_prefetch=0,
            grid=(num_groups,),
            in_specs=[
                pl.BlockSpec((M, M), lambda i: (i, 0)),        # block-diag adjacency
                pl.BlockSpec((M, D), lambda i: (i, 0)),        # node feats
                pl.BlockSpec((GROUP, M), lambda i: (i, 0)),    # pooling P
                pl.BlockSpec((D, D), lambda i: (0, 0)),        # W1 (grid-invariant)
                pl.BlockSpec((1, D), lambda i: (0, 0)),        # b1
                pl.BlockSpec((D, D), lambda i: (0, 0)),        # W2
                pl.BlockSpec((1, D), lambda i: (0, 0)),        # b2
            ],
            out_specs=pl.BlockSpec((GROUP, D), lambda i: (i, 0)),
        ),
        compiler_params=pltpu.CompilerParams(dimension_semantics=("parallel",)),
    )(a_bd, x, pool_w, w1b, b1f, w2b, b2f)
    return out[:B]


def _reference_forward(nnodes, adj, feats, w1, b1, w2, b2):
    h = jnp.einsum("bij,bjd->bid", adj, feats)
    h = jnp.maximum(h @ w1 + b1, 0.0)
    h = jnp.einsum("bij,bjd->bid", adj, h)
    h = jnp.maximum(h @ w2 + b2, 0.0)
    mask = (jnp.arange(N)[None, :, None] < nnodes[:, None, None]).astype(jnp.float32)
    return jnp.sum(h * mask, axis=1) / nnodes[:, None].astype(jnp.float32)


def _tree_to_graph(key, n_nodes, nonterminal_embs):
    """Host-side glue mimicking tree_to_graph: random tree -> (A_hat, X)."""
    kp, kt = jax.random.split(key)
    u = np.asarray(jax.random.uniform(kp, (n_nodes,)))
    parents = np.floor(u * np.arange(n_nodes)).astype(np.int32)      # parent[i] in [0, i)
    types = np.asarray(jax.random.randint(kt, (n_nodes,), 0, NUM_NT))

    A = np.zeros((N, N), np.float32)
    for i in range(1, n_nodes):
        p = int(parents[i])
        A[i, p] = 1.0
        A[p, i] = 1.0
    for i in range(n_nodes):
        A[i, i] = 1.0                                                 # self loops
    deg = A.sum(axis=1)
    dinv = np.where(deg > 0, 1.0 / np.sqrt(np.maximum(deg, 1e-12)), 0.0)
    A_hat = (dinv[:, None] * A * dinv[None, :]).astype(np.float32)

    X = np.zeros((N, D), np.float32)
    X[:n_nodes] = np.asarray(nonterminal_embs)[types]
    return A_hat, X


if __name__ == "__main__":
    key = jax.random.PRNGKey(0)
    k_emb, k_w1, k_w2, k_g0, k_g1 = jax.random.split(key, 5)

    # create_nonterminal_embs: embedding table for nonterminal symbols.
    nonterminal_embs = jax.random.normal(k_emb, (NUM_NT, D), jnp.float32) * 0.1

    # GNN(2, device) parameters: two GCN layers, deterministic init.
    scale = 1.0 / np.sqrt(D)
    w1 = jax.random.normal(k_w1, (D, D), jnp.float32) * scale
    b1 = jnp.zeros((1, D), jnp.float32) + 0.01
    w2 = jax.random.normal(k_w2, (D, D), jnp.float32) * scale
    b2 = jnp.zeros((1, D), jnp.float32) + 0.01

    # term_asts: a list of 2 ASTs (12-node and 16-node trees), padded to N.
    graph_sizes = [12, 16]
    graph_keys = [k_g0, k_g1]
    adjs, feats_list = [], []
    for kg, n in zip(graph_keys, graph_sizes):
        a, x = _tree_to_graph(kg, n, nonterminal_embs)
        adjs.append(a)
        feats_list.append(x)

    adj = jnp.asarray(np.stack(adjs))                   # (B, N, N)
    feat = jnp.asarray(np.stack(feats_list))            # (B, N, D)
    nnodes = jnp.asarray(graph_sizes, dtype=jnp.int32)  # (B,)

    out = term_encoder_forward(nnodes, adj, feat, w1, b1, w2, b2)
    out = jax.block_until_ready(out)

    ref = _reference_forward(nnodes, adj, feat, w1, b1, w2, b2)
    # bf16 MXU operands (f32 accumulation): relaxed tolerance vs the f32 reference.
    np.testing.assert_allclose(np.asarray(out), np.asarray(ref), rtol=5e-2, atol=5e-3)

    print("KERNEL_OK")
</pallas_src>

<mosaic_0001>
module attributes {stable_mosaic.version = 11 : i64} {
  func.func @_gnn_kernel(%arg0: i32, %arg1: memref<256x256xbf16, #tpu.memory_space<vmem>>, %arg2: memref<256x128xbf16, #tpu.memory_space<vmem>>, %arg3: memref<16x256xf32, #tpu.memory_space<vmem>>, %arg4: memref<128x128xbf16, #tpu.memory_space<vmem>>, %arg5: memref<1x128xf32, #tpu.memory_space<vmem>>, %arg6: memref<128x128xbf16, #tpu.memory_space<vmem>>, %arg7: memref<1x128xf32, #tpu.memory_space<vmem>>, %arg8: memref<16x128xf32, #tpu.memory_space<vmem>>) attributes {dimension_semantics = [#tpu.dimension_semantics<parallel>], iteration_bounds = array<i64: 2>, scalar_prefetch = 0 : i64, scratch_operands = 0 : i64, tpu.core_type = #tpu.core_type<tc>, window_params = [{transform_indices = @transform_0, window_bounds = array<i64: 256, 256>}, {transform_indices = @transform_1, window_bounds = array<i64: 256, 128>}, {transform_indices = @transform_2, window_bounds = array<i64: 16, 256>}, {pipeline_mode = #tpu.pipeline_mode<synchronous>, transform_indices = @transform_3, window_bounds = array<i64: 128, 128>}, {pipeline_mode = #tpu.pipeline_mode<synchronous>, transform_indices = @transform_4, window_bounds = array<i64: 1, 128>}, {pipeline_mode = #tpu.pipeline_mode<synchronous>, transform_indices = @transform_5, window_bounds = array<i64: 128, 128>}, {pipeline_mode = #tpu.pipeline_mode<synchronous>, transform_indices = @transform_6, window_bounds = array<i64: 1, 128>}, {transform_indices = @transform_7, window_bounds = array<i64: 16, 128>}]} {
    %c0 = arith.constant 0 : index
    %c0_0 = arith.constant 0 : index
    %0 = vector.load %arg1[%c0, %c0_0] : memref<256x256xbf16, #tpu.memory_space<vmem>>, vector<256x256xbf16>
    %c0_1 = arith.constant 0 : index
    %c0_2 = arith.constant 0 : index
    %1 = vector.load %arg2[%c0_1, %c0_2] : memref<256x128xbf16, #tpu.memory_space<vmem>>, vector<256x128xbf16>
    %cst = arith.constant dense<0.000000e+00> : vector<256x128xf32>
    %2 = tpu.matmul %0, %1, %cst {dimension_numbers = #tpu.dot_dimension_numbers<[1], [0], [0], [1], [0, 0, 1, 1], [], []>} : vector<256x256xbf16>, vector<256x128xbf16>, vector<256x128xf32> -> vector<256x128xf32>
    %3 = arith.truncf %2 : vector<256x128xf32> to vector<256x128xbf16>
    %c0_3 = arith.constant 0 : index
    %c0_4 = arith.constant 0 : index
    %4 = vector.load %arg4[%c0_3, %c0_4] : memref<128x128xbf16, #tpu.memory_space<vmem>>, vector<128x128xbf16>
    %cst_5 = arith.constant dense<0.000000e+00> : vector<256x128xf32>
    %5 = tpu.matmul %3, %4, %cst_5 {dimension_numbers = #tpu.dot_dimension_numbers<[1], [0], [0], [1], [0, 0, 1, 1], [], []>} : vector<256x128xbf16>, vector<128x128xbf16>, vector<256x128xf32> -> vector<256x128xf32>
    %c0_6 = arith.constant 0 : index
    %c0_7 = arith.constant 0 : index
    %6 = vector.load %arg5[%c0_6, %c0_7] : memref<1x128xf32, #tpu.memory_space<vmem>>, vector<1x128xf32>
    %7 = vector.broadcast %6 : vector<1x128xf32> to vector<256x128xf32>
    %8 = arith.addf %5, %7 : vector<256x128xf32>
    %cst_8 = arith.constant 0.000000e+00 : f32
    %9 = vector.broadcast %cst_8 : f32 to vector<256x128xf32>
    %10 = arith.maximumf %8, %9 : vector<256x128xf32>
    %11 = arith.truncf %10 : vector<256x128xf32> to vector<256x128xbf16>
    %cst_9 = arith.constant dense<0.000000e+00> : vector<256x128xf32>
    %12 = tpu.matmul %0, %11, %cst_9 {dimension_numbers = #tpu.dot_dimension_numbers<[1], [0], [0], [1], [0, 0, 1, 1], [], []>} : vector<256x256xbf16>, vector<256x128xbf16>, vector<256x128xf32> -> vector<256x128xf32>
    %13 = arith.truncf %12 : vector<256x128xf32> to vector<256x128xbf16>
    %c0_10 = arith.constant 0 : index
    %c0_11 = arith.constant 0 : index
    %14 = vector.load %arg6[%c0_10, %c0_11] : memref<128x128xbf16, #tpu.memory_space<vmem>>, vector<128x128xbf16>
    %cst_12 = arith.constant dense<0.000000e+00> : vector<256x128xf32>
    %15 = tpu.matmul %13, %14, %cst_12 {dimension_numbers = #tpu.dot_dimension_numbers<[1], [0], [0], [1], [0, 0, 1, 1], [], []>} : vector<256x128xbf16>, vector<128x128xbf16>, vector<256x128xf32> -> vector<256x128xf32>
    %c0_13 = arith.constant 0 : index
    %c0_14 = arith.constant 0 : index
    %16 = vector.load %arg7[%c0_13, %c0_14] : memref<1x128xf32, #tpu.memory_space<vmem>>, vector<1x128xf32>
    %17 = vector.broadcast %16 : vector<1x128xf32> to vector<256x128xf32>
    %18 = arith.addf %15, %17 : vector<256x128xf32>
    %cst_15 = arith.constant 0.000000e+00 : f32
    %19 = vector.broadcast %cst_15 : f32 to vector<256x128xf32>
    %20 = arith.maximumf %18, %19 : vector<256x128xf32>
    %c0_16 = arith.constant 0 : index
    %c0_17 = arith.constant 0 : index
    %21 = vector.load %arg3[%c0_16, %c0_17] : memref<16x256xf32, #tpu.memory_space<vmem>>, vector<16x256xf32>
    %cst_18 = arith.constant dense<0.000000e+00> : vector<16x128xf32>
    %22 = tpu.matmul %21, %20, %cst_18 {dimension_numbers = #tpu.dot_dimension_numbers<[1], [0], [0], [1], [0, 0, 1, 1], [], []>} : vector<16x256xf32>, vector<256x128xf32>, vector<16x128xf32> -> vector<16x128xf32>
    %c0_19 = arith.constant 0 : index
    %c0_20 = arith.constant 0 : index
    %23 = vector.load %arg8[%c0_19, %c0_20] : memref<16x128xf32, #tpu.memory_space<vmem>>, vector<16x128xf32>
    tpu.vector_store %arg8[%c0_19, %c0_20], %22 {strides = array<i32>} : memref<16x128xf32, #tpu.memory_space<vmem>>, vector<16x128xf32>,
    return
  }
  func.func @transform_0(%arg0: i32) -> (i32, i32) {
    %c0_i32 = arith.constant 0 : i32
    %c0_i32_0 = arith.constant 0 : i32
    return %arg0, %c0_i32 : i32, i32
  }
  func.func @transform_1(%arg0: i32) -> (i32, i32) {
    %c0_i32 = arith.constant 0 : i32
    %c0_i32_0 = arith.constant 0 : i32
    return %arg0, %c0_i32 : i32, i32
  }
  func.func @transform_2(%arg0: i32) -> (i32, i32) {
    %c0_i32 = arith.constant 0 : i32
    %c0_i32_0 = arith.constant 0 : i32
    return %arg0, %c0_i32 : i32, i32
  }
  func.func @transform_3(%arg0: i32) -> (i32, i32) {
    %c0_i32 = arith.constant 0 : i32
    %c0_i32_0 = arith.constant 0 : i32
    %c0_i32_1 = arith.constant 0 : i32
    return %c0_i32, %c0_i32_0 : i32, i32
  }
  func.func @transform_4(%arg0: i32) -> (i32, i32) {
    %c0_i32 = arith.constant 0 : i32
    %c0_i32_0 = arith.constant 0 : i32
    %c0_i32_1 = arith.constant 0 : i32
    return %c0_i32, %c0_i32_0 : i32, i32
  }
  func.func @transform_5(%arg0: i32) -> (i32, i32) {
    %c0_i32 = arith.constant 0 : i32
    %c0_i32_0 = arith.constant 0 : i32
    %c0_i32_1 = arith.constant 0 : i32
    return %c0_i32, %c0_i32_0 : i32, i32
  }
  func.func @transform_6(%arg0: i32) -> (i32, i32) {
    %c0_i32 = arith.constant 0 : i32
    %c0_i32_0 = arith.constant 0 : i32
    %c0_i32_1 = arith.constant 0 : i32
    return %c0_i32, %c0_i32_0 : i32, i32
  }
  func.func @transform_7(%arg0: i32) -> (i32, i32) {
    %c0_i32 = arith.constant 0 : i32
    %c0_i32_0 = arith.constant 0 : i32
    return %arg0, %c0_i32 : i32, i32
  }
}

</mosaic_0001>

<llo_original>
// kernel: tpu_custom_call.1
$region0: #{tpu_custom_call.1}
  #allocation0 [shape = 'u32[]', space=smem, size = 0x4, offset = 0x4, fixed_abs, tag = 'smem constant byte address 0x4 - core index']
  #allocation1 [shape = 'u32[144,128]{1,0:T(1,128)}', space=vmem, size = 0x12000, scoped, tag = 'internal scratch']
  %s0 = inlined_call_operand.hbm [shape: bf16[512,256], index: 0, kind: input, shape index: {}]
  %s1 = inlined_call_operand.hbm [shape: bf16[512,128], index: 1, kind: input, shape index: {}]
  %s2 = inlined_call_operand.hbm [shape: f32[32,256], index: 2, kind: input, shape index: {}]
  %s3 = inlined_call_operand.hbm [shape: bf16[128,128], index: 3, kind: input, shape index: {}]
  %s4 = inlined_call_operand.vmem [shape: f32[1,128], index: 4, kind: input, shape index: {}]
  %s5 = inlined_call_operand.hbm [shape: bf16[128,128], index: 5, kind: input, shape index: {}]
  %s6 = inlined_call_operand.vmem [shape: f32[1,128], index: 6, kind: input, shape index: {}]
  %s7 = inlined_call_operand.hbm [shape: f32[32,128], index: 7, kind: output, shape index: {}]
  %s8 = sld [smem:[#allocation0]]
  $region81: #{tpu_custom_call.1} parent=0
    _
  %s10 = ssub.s32 1, %s8
  %s11 = scalar_select 0, %s10, %s8
  $region1: #{tpu_custom_call.1} parent=0
    #allocation2 [shape = 'u8[262144]{0}', space=vmem, size = 0x40000, scoped, tag = 'input window, operand 0']
    #allocation3 [shape = 's32[2]{0}', space=sflag, size = 0x8, scoped, tag = 'scoped memory for tpu_custom_call.1']
    #allocation4 [shape = 's32[2]{0}', space=sflag, size = 0x8, scoped, tag = 'scoped memory for tpu_custom_call.1']
    #allocation5 [shape = 'u8[131072]{0}', space=vmem, size = 0x20000, scoped, tag = 'input window, operand 1']
    #allocation6 [shape = 's32[2]{0}', space=sflag, size = 0x8, scoped, tag = 'scoped memory for tpu_custom_call.1']
    #allocation7 [shape = 'u8[32768]{0}', space=vmem, size = 0x8000, scoped, tag = 'input window, operand 2']
    #allocation8 [shape = 'u8[32768]{0}', space=vmem, size = 0x8000, scoped, tag = 'input window, operand 3, single buffered']
    #allocation9 [shape = 's32[1]{0}', space=sflag, size = 0x4, scoped, tag = 'scoped memory for tpu_custom_call.1']
    #allocation10 [shape = 'u8[32768]{0}', space=vmem, size = 0x8000, scoped, tag = 'input window, operand 5, single buffered']
    #allocation11 [shape = 'u8[16384]{0}', space=vmem, size = 0x4000, scoped, tag = 'output window, operand 0']
    %12 = vsyncpa [#allocation3], 0
    %s13 = scalar_lea.sflag [#allocation3], 1
    %14 = vsyncpa %s13, 0
    %15 = vsyncpa [#allocation6], 0
    %s16 = scalar_lea.sflag [#allocation6], 1
    %17 = vsyncpa %s16, 0
    %18 = vsyncpa [#allocation9], 0
    %19 = vsyncpa [#allocation4], 0
    %s20 = scalar_lea.sflag [#allocation4], 1
    %21 = vsyncpa %s20, 0
    loop: start=0, step=1, limit=4
    $region2: #{tpu_custom_call.1} parent=1 // loop_pre_header
      _
    $region3: #{tpu_custom_call.1} parent=1 // loop_header
      %s23 = sphi 0, %s27
      %p24 = scmp.ge.s32.totalorder %s23, 4
      %s33 = sphi 0, %s35
      %s36 = sphi 0, %s33
      %s37 = sphi 0, %s36
      %s53 = sphi 0, %s37
      %s59 = sphi 0, %s61
      %s62 = sphi 0, %s59
      %s63 = sphi 0, %s62
      %s79 = sphi 0, %s63
      %s85 = sphi 0, %s87
      %s88 = sphi 0, %s85
      %s89 = sphi 0, %s88
      %s105 = sphi 0, %s89
      %s109 = sphi 0, %s109
      %s111 = sphi 0, %s109
      %s112 = sphi 0, %s111
      %s126 = sphi 0, %s112
      %s130 = sphi 0, %s130
      %s132 = sphi 0, %s130
      %s133 = sphi 0, %s132
      %s147 = sphi 0, %s133
      %s151 = sphi 0, %s151
      %s153 = sphi 0, %s151
      %s154 = sphi 0, %s153
      %s168 = sphi 0, %s154
      %s172 = sphi 0, %s172
      %s174 = sphi 0, %s172
      %s175 = sphi 0, %s174
      %s189 = sphi 0, %s175
      %s195 = sphi 0, %s197
      %s198 = sphi 0, %s195
      %s199 = sphi 0, %s198
      %s215 = sphi 0, %s199
    $region4: #{tpu_custom_call.1} parent=1 // loop_header_branch
      %26 = sbr.rel (%p24) target = $region8
    $region5: #{tpu_custom_call.1} parent=1 // loop_body
      %s28 = ssub.s32 %s23, 1
      %s29 = ssub.s32 %s23, 2
      %s30 = sadd.s32 %s23, 1
      %s31 = ssub.s32 %s23, %s30
      %p32 = scmp.eq.s32.totalorder %s31, 0
      %s34 = sadd.s32 %s33, 1
      %s35 = scalar_select %p32, %s33, %s34
      %p38 = pneg %p32
      %p39 = scmp.eq.s32.totalorder %s23, 1
      %p40 = por %p38, %p39
      %p41 = scmp.ne.s32.totalorder %s33, %s36
      %p42 = scmp.eq.s32.totalorder %s23, 0
      %p43 = por %p41, %p42
      %p44 = scmp.ne.s32.totalorder %s33, %s36
      %p45 = scmp.eq.s32.totalorder %s28, 1
      %p46 = por %p44, %p45
      %p47 = scmp.ne.s32.totalorder %s36, %s37
      %p48 = scmp.eq.s32.totalorder %s28, 0
      %p49 = por %p47, %p48
      %p50 = scmp.ne.s32.totalorder %s36, %s37
      %p51 = scmp.eq.s32.totalorder %s29, 1
      %p52 = por %p50, %p51
      %p54 = scmp.ne.s32.totalorder %s37, %s53
      %p55 = scmp.eq.s32.totalorder %s29, 0
      %p56 = por %p54, %p55
      %s57 = ssub.s32 %s23, %s30
      %p58 = scmp.eq.s32.totalorder %s57, 0
      %s60 = sadd.s32 %s59, 1
      %s61 = scalar_select %p58, %s59, %s60
      %p64 = pneg %p58
      %p65 = scmp.eq.s32.totalorder %s23, 1
      %p66 = por %p64, %p65
      %p67 = scmp.ne.s32.totalorder %s59, %s62
      %p68 = scmp.eq.s32.totalorder %s23, 0
      %p69 = por %p67, %p68
      %p70 = scmp.ne.s32.totalorder %s59, %s62
      %p71 = scmp.eq.s32.totalorder %s28, 1
      %p72 = por %p70, %p71
      %p73 = scmp.ne.s32.totalorder %s62, %s63
      %p74 = scmp.eq.s32.totalorder %s28, 0
      %p75 = por %p73, %p74
      %p76 = scmp.ne.s32.totalorder %s62, %s63
      %p77 = scmp.eq.s32.totalorder %s29, 1
      %p78 = por %p76, %p77
      %p80 = scmp.ne.s32.totalorder %s63, %s79
      %p81 = scmp.eq.s32.totalorder %s29, 0
      %p82 = por %p80, %p81
      %s83 = ssub.s32 %s23, %s30
      %p84 = scmp.eq.s32.totalorder %s83, 0
      %s86 = sadd.s32 %s85, 1
      %s87 = scalar_select %p84, %s85, %s86
      %p90 = pneg %p84
      %p91 = scmp.eq.s32.totalorder %s23, 1
      %p92 = por %p90, %p91
      %p93 = scmp.ne.s32.totalorder %s85, %s88
      %p94 = scmp.eq.s32.totalorder %s23, 0
      %p95 = por %p93, %p94
      %p96 = scmp.ne.s32.totalorder %s85, %s88
      %p97 = scmp.eq.s32.totalorder %s28, 1
      %p98 = por %p96, %p97
      %p99 = scmp.ne.s32.totalorder %s88, %s89
      %p100 = scmp.eq.s32.totalorder %s28, 0
      %p101 = por %p99, %p100
      %p102 = scmp.ne.s32.totalorder %s88, %s89
      %p103 = scmp.eq.s32.totalorder %s29, 1
      %p104 = por %p102, %p103
      %p106 = scmp.ne.s32.totalorder %s89, %s105
      %p107 = scmp.eq.s32.totalorder %s29, 0
      %p108 = por %p106, %p107
      %s110 = sadd.s32 %s109, 1
      %p113 = scmp.eq.s32.totalorder %s23, 1
      %p114 = scmp.ne.s32.totalorder %s109, %s111
      %p115 = scmp.eq.s32.totalorder %s23, 0
      %p116 = por %p114, %p115
      %p117 = scmp.ne.s32.totalorder %s109, %s111
      %p118 = scmp.eq.s32.totalorder %s28, 1
      %p119 = por %p117, %p118
      %p120 = scmp.ne.s32.totalorder %s111, %s112
      %p121 = scmp.eq.s32.totalorder %s28, 0
      %p122 = por %p120, %p121
      %p123 = scmp.ne.s32.totalorder %s111, %s112
      %p124 = scmp.eq.s32.totalorder %s29, 1
      %p125 = por %p123, %p124
      %p127 = scmp.ne.s32.totalorder %s112, %s126
      %p128 = scmp.eq.s32.totalorder %s29, 0
      %p129 = por %p127, %p128
      %s131 = sadd.s32 %s130, 1
      %p134 = scmp.eq.s32.totalorder %s23, 1
      %p135 = scmp.ne.s32.totalorder %s130, %s132
      %p136 = scmp.eq.s32.totalorder %s23, 0
      %p137 = por %p135, %p136
      %p138 = scmp.ne.s32.totalorder %s130, %s132
      %p139 = scmp.eq.s32.totalorder %s28, 1
      %p140 = por %p138, %p139
      %p141 = scmp.ne.s32.totalorder %s132, %s133
      %p142 = scmp.eq.s32.totalorder %s28, 0
      %p143 = por %p141, %p142
      %p144 = scmp.ne.s32.totalorder %s132, %s133
      %p145 = scmp.eq.s32.totalorder %s29, 1
      %p146 = por %p144, %p145
      %p148 = scmp.ne.s32.totalorder %s133, %s147
      %p149 = scmp.eq.s32.totalorder %s29, 0
      %p150 = por %p148, %p149
      %s152 = sadd.s32 %s151, 1
      %p155 = scmp.eq.s32.totalorder %s23, 1
      %p156 = scmp.ne.s32.totalorder %s151, %s153
      %p157 = scmp.eq.s32.totalorder %s23, 0
      %p158 = por %p156, %p157
      %p159 = scmp.ne.s32.totalorder %s151, %s153
      %p160 = scmp.eq.s32.totalorder %s28, 1
      %p161 = por %p159, %p160
      %p162 = scmp.ne.s32.totalorder %s153, %s154
      %p163 = scmp.eq.s32.totalorder %s28, 0
      %p164 = por %p162, %p163
      %p165 = scmp.ne.s32.totalorder %s153, %s154
      %p166 = scmp.eq.s32.totalorder %s29, 1
      %p167 = por %p165, %p166
      %p169 = scmp.ne.s32.totalorder %s154, %s168
      %p170 = scmp.eq.s32.totalorder %s29, 0
      %p171 = por %p169, %p170
      %s173 = sadd.s32 %s172, 1
      %p176 = scmp.eq.s32.totalorder %s23, 1
      %p177 = scmp.ne.s32.totalorder %s172, %s174
      %p178 = scmp.eq.s32.totalorder %s23, 0
      %p179 = por %p177, %p178
      %p180 = scmp.ne.s32.totalorder %s172, %s174
      %p181 = scmp.eq.s32.totalorder %s28, 1
      %p182 = por %p180, %p181
      %p183 = scmp.ne.s32.totalorder %s174, %s175
      %p184 = scmp.eq.s32.totalorder %s28, 0
      %p185 = por %p183, %p184
      %p186 = scmp.ne.s32.totalorder %s174, %s175
      %p187 = scmp.eq.s32.totalorder %s29, 1
      %p188 = por %p186, %p187
      %p190 = scmp.ne.s32.totalorder %s175, %s189
      %p191 = scmp.eq.s32.totalorder %s29, 0
      %p192 = por %p190, %p191
      %s193 = ssub.s32 %s23, %s30
      %p194 = scmp.eq.s32.totalorder %s193, 0
      %s196 = sadd.s32 %s195, 1
      %s197 = scalar_select %p194, %s195, %s196
      %p200 = pneg %p194
      %p201 = scmp.eq.s32.totalorder %s23, 1
      %p202 = por %p200, %p201
      %p203 = scmp.ne.s32.totalorder %s195, %s198
      %p204 = scmp.eq.s32.totalorder %s23, 0
      %p205 = por %p203, %p204
      %p206 = scmp.ne.s32.totalorder %s195, %s198
      %p207 = scmp.eq.s32.totalorder %s28, 1
      %p208 = por %p206, %p207
      %p209 = scmp.ne.s32.totalorder %s198, %s199
      %p210 = scmp.eq.s32.totalorder %s28, 0
      %p211 = por %p209, %p210
      %p212 = scmp.ne.s32.totalorder %s198, %s199
      %p213 = scmp.eq.s32.totalorder %s29, 1
      %p214 = por %p212, %p213
      %p216 = scmp.ne.s32.totalorder %s199, %s215
      %p217 = scmp.eq.s32.totalorder %s29, 0
      %p218 = por %p216, %p217
      %p219 = scmp.le.s32.totalorder 1, %s23
      %p220 = scmp.lt.s32.totalorder %s23, 3
      %p221 = pnand %p219, %p220
      %p222 = pneg %p221
      // Predicated region
      $region9: #{tpu_custom_call.1} parent=5 // pred_check
        _
      $region10: #{tpu_custom_call.1} parent=5 // pred_check_branch
        %224 = sbr.rel (%p221) target = $region12
      $region11: #{tpu_custom_call.1} parent=5 // pred_region
        %s225 = ssub.s32 %s23, 1
        // Predicated region
        $region13: #{tpu_custom_call.1} parent=11 // pred_check
          %p226 = pneg %p122
        $region14: #{tpu_custom_call.1} parent=11 // pred_check_branch
          %228 = sbr.rel (%p226) target = $region16
        $region15: #{tpu_custom_call.1} parent=11 // pred_region
          %s230 = ssub.s32 1024, 1024
          %231 = vsyncadd [#allocation9], %s230
          %s232 = sshll.u32 [#allocation8], 4
          %s233 = int_to_ptr.vmem [resolvable:$true] %s232
          %238 = dma.hbm_to_vmem [thread:$0]  %s3, 1024, %s233, [#allocation9], 64, 64, 4
        $region16: #{tpu_custom_call.1} parent=11 // pred_fallthru
          _
        // Predicated region
        $region17: #{tpu_custom_call.1} parent=11 // pred_check
          %p239 = pneg %p143
        $region18: #{tpu_custom_call.1} parent=11 // pred_check_branch
          %241 = sbr.rel (%p239) target = $region20
        $region19: #{tpu_custom_call.1} parent=11 // pred_region
          _
        $region20: #{tpu_custom_call.1} parent=11 // pred_fallthru
          _
        // Predicated region
        $region21: #{tpu_custom_call.1} parent=11 // pred_check
          %p242 = pneg %p164
        $region22: #{tpu_custom_call.1} parent=11 // pred_check_branch
          %244 = sbr.rel (%p242) target = $region24
        $region23: #{tpu_custom_call.1} parent=11 // pred_region
          %s246 = ssub.s32 1024, 1024
          %247 = vsyncadd [#allocation9], %s246
          %s248 = sshll.u32 [#allocation10], 4
          %s249 = int_to_ptr.vmem [resolvable:$true] %s248
          %254 = dma.hbm_to_vmem [thread:$0]  %s5, 1024, %s249, [#allocation9], 64, 64, 4
        $region24: #{tpu_custom_call.1} parent=11 // pred_fallthru
          _
        // Predicated region
        $region25: #{tpu_custom_call.1} parent=11 // pred_check
          %p255 = pneg %p185
        $region26: #{tpu_custom_call.1} parent=11 // pred_check_branch
          %257 = sbr.rel (%p255) target = $region28
        $region27: #{tpu_custom_call.1} parent=11 // pred_region
          _
        $region28: #{tpu_custom_call.1} parent=11 // pred_fallthru
          _
      $region12: #{tpu_custom_call.1} parent=5 // pred_fallthru
        _
      %p258 = scmp.lt.s32.totalorder %s23, 2
      // Predicated region
      $region29: #{tpu_custom_call.1} parent=5 // pred_check
        %p259 = pneg %p258
      $region30: #{tpu_custom_call.1} parent=5 // pred_check_branch
        %261 = sbr.rel (%p259) target = $region32
      $region31: #{tpu_custom_call.1} parent=5 // pred_region
        // Predicated region
        $region33: #{tpu_custom_call.1} parent=31 // pred_check
          %p262 = pneg %p43
        $region34: #{tpu_custom_call.1} parent=31 // pred_check_branch
          %264 = sbr.rel (%p262) target = $region36
        $region35: #{tpu_custom_call.1} parent=31 // pred_region
          %s265 = sand.u32 %s33, 1
          %s266 = scalar_lea.sflag [#allocation3], %s265
          %s267 = sand.u32 %s33, 1
          %s268 = smul.addr %s267, 256
          %s269 = scalar_lea.vmem [#allocation2], %s268
          %s270 = smul.u32 32, %s23
          %s272 = ssub.s32 4096, 4096
          %273 = vsyncadd %s266, %s272
          %s274 = smul.addr %s270, 2
          %s275 = smul.addr %s274, 64
          %s276 = scalar_lea.hbm %s0, %s275
          %s277 = sshll.u32 %s269, 4
          %s278 = int_to_ptr.vmem [resolvable:$true] %s277
          %283 = dma.hbm_to_vmem [thread:$0]  %s276, 4096, %s278, %s266, 128, 128, 8
        $region36: #{tpu_custom_call.1} parent=31 // pred_fallthru
          _
        // Predicated region
        $region37: #{tpu_custom_call.1} parent=31 // pred_check
          %p284 = pneg %p69
        $region38: #{tpu_custom_call.1} parent=31 // pred_check_branch
          %286 = sbr.rel (%p284) target = $region40
        $region39: #{tpu_custom_call.1} parent=31 // pred_region
          %s287 = sand.u32 %s23, 1
          %s288 = scalar_lea.sflag [#allocation6], %s287
          %s289 = sand.u32 %s59, 1
          %s290 = smul.addr %s289, 128
          %s291 = scalar_lea.vmem [#allocation5], %s290
          %s292 = smul.u32 32, %s23
          %s294 = ssub.s32 2048, 2048
          %295 = vsyncadd %s288, %s294
          %s296 = smul.addr %s292, 64
          %s297 = scalar_lea.hbm %s1, %s296
          %s298 = sshll.u32 %s291, 4
          %s299 = int_to_ptr.vmem [resolvable:$true] %s298
          %304 = dma.hbm_to_vmem [thread:$0]  %s297, 2048, %s299, %s288, 64, 64, 4
        $region40: #{tpu_custom_call.1} parent=31 // pred_fallthru
          _
        // Predicated region
        $region41: #{tpu_custom_call.1} parent=31 // pred_check
          %p305 = pneg %p95
        $region42: #{tpu_custom_call.1} parent=31 // pred_check_branch
          %307 = sbr.rel (%p305) target = $region44
        $region43: #{tpu_custom_call.1} parent=31 // pred_region
          %s308 = sand.u32 %s23, 1
          %s309 = scalar_lea.sflag [#allocation6], %s308
          %s310 = sand.u32 %s85, 1
          %s311 = smul.addr %s310, 32
          %s312 = scalar_lea.vmem [#allocation7], %s311
          %s313 = smul.u32 2, %s23
          %s315 = ssub.s32 512, 512
          %316 = vsyncadd %s309, %s315
          %s317 = smul.addr %s313, 2
          %s318 = smul.addr %s317, 128
          %s319 = scalar_lea.hbm %s2, %s318
          %s320 = sshll.u32 %s312, 4
          %s321 = int_to_ptr.vmem [resolvable:$true] %s320
          %326 = dma.hbm_to_vmem [thread:$0]  %s319, 512, %s321, %s309, 256, 256, 16
        $region44: #{tpu_custom_call.1} parent=31 // pred_fallthru
          _
      $region32: #{tpu_custom_call.1} parent=5 // pred_fallthru
        _
      %p327 = scmp.le.s32.totalorder 1, %s23
      %p328 = scmp.lt.s32.totalorder %s23, 3
      %p329 = pnand %p327, %p328
      %p330 = pneg %p329
      // Predicated region
      $region45: #{tpu_custom_call.1} parent=5 // pred_check
        _
      $region46: #{tpu_custom_call.1} parent=5 // pred_check_branch
        %332 = sbr.rel (%p329) target = $region48
      $region47: #{tpu_custom_call.1} parent=5 // pred_region
        %s333 = ssub.s32 %s23, 1
        %s334 = sand.u32 %s36, 1
        %s335 = scalar_lea.sflag [#allocation3], %s334
        %s336 = sand.u32 %s36, 1
        %s337 = smul.addr %s336, 256
        %s338 = scalar_lea.vmem [#allocation2], %s337
        // Predicated region
        $region49: #{tpu_custom_call.1} parent=47 // pred_check
          %p339 = pneg %p49
        $region50: #{tpu_custom_call.1} parent=47 // pred_check_branch
          %341 = sbr.rel (%p339) target = $region52
        $region51: #{tpu_custom_call.1} parent=47 // pred_region
          %342 = dma.done %s335, 4096
        $region52: #{tpu_custom_call.1} parent=47 // pred_fallthru
          _
        %s343 = sand.u32 %s28, 1
        %s344 = scalar_lea.sflag [#allocation6], %s343
        %s345 = sand.u32 %s62, 1
        %s346 = smul.addr %s345, 128
        %s347 = scalar_lea.vmem [#allocation5], %s346
        // Predicated region
        $region53: #{tpu_custom_call.1} parent=47 // pred_check
          %p348 = pneg %p75
        $region54: #{tpu_custom_call.1} parent=47 // pred_check_branch
          %350 = sbr.rel (%p348) target = $region56
        $region55: #{tpu_custom_call.1} parent=47 // pred_region
          %351 = dma.done %s344, 2048
        $region56: #{tpu_custom_call.1} parent=47 // pred_fallthru
          _
        %s352 = sand.u32 %s28, 1
        %s353 = scalar_lea.sflag [#allocation6], %s352
        %s354 = sand.u32 %s88, 1
        %s355 = smul.addr %s354, 32
        %s356 = scalar_lea.vmem [#allocation7], %s355
        // Predicated region
        $region57: #{tpu_custom_call.1} parent=47 // pred_check
          %p357 = pneg %p101
        $region58: #{tpu_custom_call.1} parent=47 // pred_check_branch
          %359 = sbr.rel (%p357) target = $region60
        $region59: #{tpu_custom_call.1} parent=47 // pred_region
          %360 = dma.done %s353, 512
        $region60: #{tpu_custom_call.1} parent=47 // pred_fallthru
          _
        // Predicated region
        $region61: #{tpu_custom_call.1} parent=47 // pred_check
          %p361 = pneg %p122
        $region62: #{tpu_custom_call.1} parent=47 // pred_check_branch
          %363 = sbr.rel (%p361) target = $region64
        $region63: #{tpu_custom_call.1} parent=47 // pred_region
          %364 = dma.done [#allocation9], 1024
        $region64: #{tpu_custom_call.1} parent=47 // pred_fallthru
          _
        // Predicated region
        $region65: #{tpu_custom_call.1} parent=47 // pred_check
          %p365 = pneg %p164
        $region66: #{tpu_custom_call.1} parent=47 // pred_check_branch
          %367 = sbr.rel (%p365) target = $region68
        $region67: #{tpu_custom_call.1} parent=47 // pred_region
          %368 = dma.done [#allocation9], 1024
        $region68: #{tpu_custom_call.1} parent=47 // pred_fallthru
          _
        %s369 = sand.u32 %s36, 1
        %s370 = scalar_lea.sflag [#allocation3], %s369
        %s371 = sand.u32 %s36, 1
        %s372 = smul.addr %s371, 256
        %s373 = scalar_lea.vmem [#allocation2], %s372
        %p374 = pneg %p49
        %p375 = pneg %p46
        %s376 = sand.u32 %s28, 1
        %s377 = scalar_lea.sflag [#allocation6], %s376
        %s378 = sand.u32 %s62, 1
        %s379 = smul.addr %s378, 128
        %s380 = scalar_lea.vmem [#allocation5], %s379
        %p381 = pneg %p75
        %p382 = pneg %p72
        %s383 = sand.u32 %s28, 1
        %s384 = scalar_lea.sflag [#allocation6], %s383
        %s385 = sand.u32 %s88, 1
        %s386 = smul.addr %s385, 32
        %s387 = scalar_lea.vmem [#allocation7], %s386
        %p388 = pneg %p101
        %p389 = pneg %p98
        %p390 = pneg %p122
        %p391 = pneg %p119
        %p392 = pneg %p143
        %p393 = pneg %p140
        %p394 = pneg %p164
        %p395 = pneg %p161
        %p396 = pneg %p185
        %p397 = pneg %p182
        %p398 = pneg %p211
        %p399 = pneg %p208
        %s400 = sand.u32 %s198, 1
        %s401 = scalar_lea.sflag [#allocation4], %s400
        %s402 = sand.u32 %s198, 1
        %s403 = smul.addr %s402, 16
        %s404 = scalar_lea.vmem [#allocation11], %s403
        %s405 = smul.u32 32, %s28
        %s406 = smul.u32 32, %s28
        %s407 = smul.u32 2, %s28
        %s408 = smul.u32 2, %s28
        %v410 = vld [vmem:[%s338] sm:$0xff]
        %v411 = vld [vmem:[%s338 + $0x8] sm:$0xff]
        %v412 = vld [vmem:[%s338 + $0x10] sm:$0xff]
        %v413 = vld [vmem:[%s338 + $0x18] sm:$0xff]
        %v414 = vld [vmem:[%s338 + $0x20] sm:$0xff]
        %v415 = vld [vmem:[%s338 + $0x28] sm:$0xff]
        %v416 = vld [vmem:[%s338 + $0x30] sm:$0xff]
        %v417 = vld [vmem:[%s338 + $0x38] sm:$0xff]
        %v418 = vld [vmem:[%s338 + $0x40] sm:$0xff]
        %v419 = vld [vmem:[%s338 + $0x48] sm:$0xff]
        %v420 = vld [vmem:[%s338 + $0x50] sm:$0xff]
        %v421 = vld [vmem:[%s338 + $0x58] sm:$0xff]
        %v422 = vld [vmem:[%s338 + $0x60] sm:$0xff]
        %v423 = vld [vmem:[%s338 + $0x68] sm:$0xff]
        %v424 = vld [vmem:[%s338 + $0x70] sm:$0xff]
        %v425 = vld [vmem:[%s338 + $0x78] sm:$0xff]
        %v426 = vld [vmem:[%s338 + $0x80] sm:$0xff]
        %v427 = vld [vmem:[%s338 + $0x88] sm:$0xff]
        %v428 = vld [vmem:[%s338 + $0x90] sm:$0xff]
        %v429 = vld [vmem:[%s338 + $0x98] sm:$0xff]
        %v430 = vld [vmem:[%s338 + $0xa0] sm:$0xff]
        %v431 = vld [vmem:[%s338 + $0xa8] sm:$0xff]
        %v432 = vld [vmem:[%s338 + $0xb0] sm:$0xff]
        %v433 = vld [vmem:[%s338 + $0xb8] sm:$0xff]
        %v434 = vld [vmem:[%s338 + $0xc0] sm:$0xff]
        %v435 = vld [vmem:[%s338 + $0xc8] sm:$0xff]
        %v436 = vld [vmem:[%s338 + $0xd0] sm:$0xff]
        %v437 = vld [vmem:[%s338 + $0xd8] sm:$0xff]
        %v438 = vld [vmem:[%s338 + $0xe0] sm:$0xff]
        %v439 = vld [vmem:[%s338 + $0xe8] sm:$0xff]
        %v440 = vld [vmem:[%s338 + $0xf0] sm:$0xff]
        %v441 = vld [vmem:[%s338 + $0xf8] sm:$0xff]
        %v442 = vld [vmem:[%s347] sm:$0xf]
        %v443 = vld [vmem:[%s347 + $0x4] sm:$0xf]
        %v444 = vld [vmem:[%s347 + $0x8] sm:$0xf]
        %v445 = vld [vmem:[%s347 + $0xc] sm:$0xf]
        %v446 = vld [vmem:[%s347 + $0x10] sm:$0xf]
        %v447 = vld [vmem:[%s347 + $0x14] sm:$0xf]
        %v448 = vld [vmem:[%s347 + $0x18] sm:$0xf]
        %v449 = vld [vmem:[%s347 + $0x1c] sm:$0xf]
        %v450 = vld [vmem:[%s347 + $0x20] sm:$0xf]
        %v451 = vld [vmem:[%s347 + $0x24] sm:$0xf]
        %v452 = vld [vmem:[%s347 + $0x28] sm:$0xf]
        %v453 = vld [vmem:[%s347 + $0x2c] sm:$0xf]
        %v454 = vld [vmem:[%s347 + $0x30] sm:$0xf]
        %v455 = vld [vmem:[%s347 + $0x34] sm:$0xf]
        %v456 = vld [vmem:[%s347 + $0x38] sm:$0xf]
        %v457 = vld [vmem:[%s347 + $0x3c] sm:$0xf]
        %v458 = vld [vmem:[%s347 + $0x40] sm:$0xf]
        %v459 = vld [vmem:[%s347 + $0x44] sm:$0xf]
        %v460 = vld [vmem:[%s347 + $0x48] sm:$0xf]
        %v461 = vld [vmem:[%s347 + $0x4c] sm:$0xf]
        %v462 = vld [vmem:[%s347 + $0x50] sm:$0xf]
        %v463 = vld [vmem:[%s347 + $0x54] sm:$0xf]
        %v464 = vld [vmem:[%s347 + $0x58] sm:$0xf]
        %v465 = vld [vmem:[%s347 + $0x5c] sm:$0xf]
        %v466 = vld [vmem:[%s347 + $0x60] sm:$0xf]
        %v467 = vld [vmem:[%s347 + $0x64] sm:$0xf]
        %v468 = vld [vmem:[%s347 + $0x68] sm:$0xf]
        %v469 = vld [vmem:[%s347 + $0x6c] sm:$0xf]
        %v470 = vld [vmem:[%s347 + $0x70] sm:$0xf]
        %v471 = vld [vmem:[%s347 + $0x74] sm:$0xf]
        %v472 = vld [vmem:[%s347 + $0x78] sm:$0xf]
        %v473 = vld [vmem:[%s347 + $0x7c] sm:$0xf]
        %v506 = vunpack.c.l.b16 %v410
        %v507 = vunpack.c.h.b16 %v410
        %v508 = vunpack.c.l.b16 %v411
        %v509 = vunpack.c.h.b16 %v411
        %v510 = vunpack.c.l.b16 %v412
        %v511 = vunpack.c.h.b16 %v412
        %v512 = vunpack.c.l.b16 %v413
        %v513 = vunpack.c.h.b16 %v413
        %v514 = vunpack.c.l.b16 %v414
        %v515 = vunpack.c.h.b16 %v414
        %v516 = vunpack.c.l.b16 %v415
        %v517 = vunpack.c.h.b16 %v415
        %v518 = vunpack.c.l.b16 %v416
        %v519 = vunpack.c.h.b16 %v416
        %v520 = vunpack.c.l.b16 %v417
        %v521 = vunpack.c.h.b16 %v417
        %v522 = vunpack.c.l.b16 %v418
        %v523 = vunpack.c.h.b16 %v418
        %v524 = vunpack.c.l.b16 %v419
        %v525 = vunpack.c.h.b16 %v419
        %v526 = vunpack.c.l.b16 %v420
        %v527 = vunpack.c.h.b16 %v420
        %v528 = vunpack.c.l.b16 %v421
        %v529 = vunpack.c.h.b16 %v421
        %v530 = vunpack.c.l.b16 %v422
        %v531 = vunpack.c.h.b16 %v422
        %v532 = vunpack.c.l.b16 %v423
        %v533 = vunpack.c.h.b16 %v423
        %v534 = vunpack.c.l.b16 %v424
        %v535 = vunpack.c.h.b16 %v424
        %v536 = vunpack.c.l.b16 %v425
        %v537 = vunpack.c.h.b16 %v425
        %v538 = vunpack.c.l.b16 %v426
        %v539 = vunpack.c.h.b16 %v426
        %v540 = vunpack.c.l.b16 %v427
        %v541 = vunpack.c.h.b16 %v427
        %v542 = vunpack.c.l.b16 %v428
        %v543 = vunpack.c.h.b16 %v428
        %v544 = vunpack.c.l.b16 %v429
        %v545 = vunpack.c.h.b16 %v429
        %v546 = vunpack.c.l.b16 %v430
        %v547 = vunpack.c.h.b16 %v430
        %v548 = vunpack.c.l.b16 %v431
        %v549 = vunpack.c.h.b16 %v431
        %v550 = vunpack.c.l.b16 %v432
        %v551 = vunpack.c.h.b16 %v432
        %v552 = vunpack.c.l.b16 %v433
        %v553 = vunpack.c.h.b16 %v433
        %v554 = vunpack.c.l.b16 %v434
        %v555 = vunpack.c.h.b16 %v434
        %v556 = vunpack.c.l.b16 %v435
        %v557 = vunpack.c.h.b16 %v435
        %v558 = vunpack.c.l.b16 %v436
        %v559 = vunpack.c.h.b16 %v436
        %v560 = vunpack.c.l.b16 %v437
        %v561 = vunpack.c.h.b16 %v437
        %v562 = vunpack.c.l.b16 %v438
        %v563 = vunpack.c.h.b16 %v438
        %v564 = vunpack.c.l.b16 %v439
        %v565 = vunpack.c.h.b16 %v439
        %v566 = vunpack.c.l.b16 %v440
        %v567 = vunpack.c.h.b16 %v440
        %v568 = vunpack.c.l.b16 %v441
        %v569 = vunpack.c.h.b16 %v441
        %v570 = vpack.c.b16 %v508, %v506
        %v571 = vpack.c.b16 %v509, %v507
        %v572 = vpack.c.b16 %v512, %v510
        %v573 = vpack.c.b16 %v513, %v511
        %v574 = vpack.c.b16 %v516, %v514
        %v575 = vpack.c.b16 %v517, %v515
        %v576 = vpack.c.b16 %v520, %v518
        %v577 = vpack.c.b16 %v521, %v519
        %v578 = vpack.c.b16 %v524, %v522
        %v579 = vpack.c.b16 %v525, %v523
        %v580 = vpack.c.b16 %v528, %v526
        %v581 = vpack.c.b16 %v529, %v527
        %v582 = vpack.c.b16 %v532, %v530
        %v583 = vpack.c.b16 %v533, %v531
        %v584 = vpack.c.b16 %v536, %v534
        %v585 = vpack.c.b16 %v537, %v535
        %v586 = vpack.c.b16 %v540, %v538
        %v587 = vpack.c.b16 %v541, %v539
        %v588 = vpack.c.b16 %v544, %v542
        %v589 = vpack.c.b16 %v545, %v543
        %v590 = vpack.c.b16 %v548, %v546
        %v591 = vpack.c.b16 %v549, %v547
        %v592 = vpack.c.b16 %v552, %v550
        %v593 = vpack.c.b16 %v553, %v551
        %v594 = vpack.c.b16 %v556, %v554
        %v595 = vpack.c.b16 %v557, %v555
        %v596 = vpack.c.b16 %v560, %v558
        %v597 = vpack.c.b16 %v561, %v559
        %v598 = vpack.c.b16 %v564, %v562
        %v599 = vpack.c.b16 %v565, %v563
        %v600 = vpack.c.b16 %v568, %v566
        %v601 = vpack.c.b16 %v569, %v567
        %v666 = vunpack.c.l.b16 %v442
        %v667 = vunpack.c.l.b16 %v443
        %v668 = vunpack.c.l.b16 %v444
        %v669 = vunpack.c.l.b16 %v445
        %v670 = vunpack.c.l.b16 %v446
        %v671 = vunpack.c.l.b16 %v447
        %v672 = vunpack.c.l.b16 %v448
        %v673 = vunpack.c.l.b16 %v449
        %v674 = vunpack.c.l.b16 %v450
        %v675 = vunpack.c.l.b16 %v451
        %v676 = vunpack.c.l.b16 %v452
        %v677 = vunpack.c.l.b16 %v453
        %v678 = vunpack.c.l.b16 %v454
        %v679 = vunpack.c.l.b16 %v455
        %v680 = vunpack.c.l.b16 %v456
        %v681 = vunpack.c.l.b16 %v457
        %v682 = vunpack.c.l.b16 %v458
        %v683 = vunpack.c.l.b16 %v459
        %v684 = vunpack.c.l.b16 %v460
        %v685 = vunpack.c.l.b16 %v461
        %v686 = vunpack.c.l.b16 %v462
        %v687 = vunpack.c.l.b16 %v463
        %v688 = vunpack.c.l.b16 %v464
        %v689 = vunpack.c.l.b16 %v465
        %v690 = vunpack.c.l.b16 %v466
        %v691 = vunpack.c.l.b16 %v467
        %v692 = vunpack.c.l.b16 %v468
        %v693 = vunpack.c.l.b16 %v469
        %v694 = vunpack.c.l.b16 %v470
        %v695 = vunpack.c.l.b16 %v471
        %v696 = vunpack.c.l.b16 %v472
        %v697 = vunpack.c.l.b16 %v473
        %v698 = vpack.c.b16 %v667, %v666
        %v699 = vpack.c.b16 %v669, %v668
        %v700 = vpack.c.b16 %v671, %v670
        %v701 = vpack.c.b16 %v673, %v672
        %v702 = vpack.c.b16 %v675, %v674
        %v703 = vpack.c.b16 %v677, %v676
        %v704 = vpack.c.b16 %v679, %v678
        %v705 = vpack.c.b16 %v681, %v680
        %v706 = vpack.c.b16 %v683, %v682
        %v707 = vpack.c.b16 %v685, %v684
        %v708 = vpack.c.b16 %v687, %v686
        %v709 = vpack.c.b16 %v689, %v688
        %v710 = vpack.c.b16 %v691, %v690
        %v711 = vpack.c.b16 %v693, %v692
        %v712 = vpack.c.b16 %v695, %v694
        %v713 = vpack.c.b16 %v697, %v696
        %730 = vmatprep.subr.bf16.mxu0 0
        %731 = vmatpush1.bf16.msra.mxu0 %v698
        %732 = vmatprep.subr.bf16.mxu0 0
        %733 = vmatpush1.bf16.msra.mxu0 %v699
        %734 = vmatprep.subr.bf16.mxu0 0
        %735 = vmatpush1.bf16.msra.mxu0 %v700
        %736 = vmatprep.subr.bf16.mxu0 0
        %737 = vmatpush1.bf16.msra.mxu0 %v701
        %738 = vmatprep.subr.bf16.mxu0 0
        %739 = vmatpush1.bf16.msra.mxu0 %v702
        %740 = vmatprep.subr.bf16.mxu0 0
        %741 = vmatpush1.bf16.msra.mxu0 %v703
        %742 = vmatprep.subr.bf16.mxu0 0
        %743 = vmatpush1.bf16.msra.mxu0 %v704
        %744 = vmatprep.subr.bf16.mxu0 0
        %745 = vmatpush1.bf16.msra.mxu0 %v705
        %746 = vmatprep.subr.bf16.mxu0 0
        %747 = vmatpush1.bf16.msra.mxu0 %v706
        %748 = vmatprep.subr.bf16.mxu0 0
        %749 = vmatpush1.bf16.msra.mxu0 %v707
        %750 = vmatprep.subr.bf16.mxu0 0
        %751 = vmatpush1.bf16.msra.mxu0 %v708
        %752 = vmatprep.subr.bf16.mxu0 0
        %753 = vmatpush1.bf16.msra.mxu0 %v709
        %754 = vmatprep.subr.bf16.mxu0 0
        %755 = vmatpush1.bf16.msra.mxu0 %v710
        %756 = vmatprep.subr.bf16.mxu0 0
        %757 = vmatpush1.bf16.msra.mxu0 %v711
        %758 = vmatprep.subr.bf16.mxu0 0
        %759 = vmatpush1.bf16.msra.mxu0 %v712
        %760 = vmatprep.subr.bf16.mxu0 0
        %761 = vmatpush1.bf16.msra.mxu0 %v713
        %762 = vmatprep.mubr.bf16.mxu0 %v571
        %763 = vmatmul.mubr.bf16.gmra.mrb[0].mxu0 %v570
        %v764 = vpop.f32.mrb[0].mxu0
        %v765 = vadd.f32 0.0, %v764
        %v766 = vpop.f32.mrb[0].mxu0
        %v767 = vpop.f32.mrb[0].mxu0
        %v768 = vadd.f32 0.0, %v767
        %v769 = vpop.f32.mrb[0].mxu0
        %770 = vmatprep.mubr.bf16.mxu0 %v573
        %771 = vmatmul.mubr.bf16.gmra.mrb[0].mxu0 %v572
        %v772 = vpop.f32.mrb[0].mxu0
        %v773 = vadd.f32 0.0, %v772
        %v774 = vpop.f32.mrb[0].mxu0
        %v775 = vpop.f32.mrb[0].mxu0
        %v776 = vadd.f32 0.0, %v775
        %v777 = vpop.f32.mrb[0].mxu0
        %778 = vmatprep.mubr.bf16.mxu0 %v575
        %779 = vmatmul.mubr.bf16.gmra.mrb[0].mxu0 %v574
        %v780 = vpop.f32.mrb[0].mxu0
        %v781 = vadd.f32 0.0, %v780
        %v782 = vpop.f32.mrb[0].mxu0
        %v783 = vpop.f32.mrb[0].mxu0
        %v784 = vadd.f32 0.0, %v783
        %v785 = vpop.f32.mrb[0].mxu0
        %786 = vmatprep.mubr.bf16.mxu0 %v577
        %787 = vmatmul.mubr.bf16.gmra.mrb[0].mxu0 %v576
        %v788 = vpop.f32.mrb[0].mxu0
        %v789 = vadd.f32 0.0, %v788
        %v790 = vpop.f32.mrb[0].mxu0
        %v791 = vpop.f32.mrb[0].mxu0
        %v792 = vadd.f32 0.0, %v791
        %v793 = vpop.f32.mrb[0].mxu0
        %794 = vmatprep.mubr.bf16.mxu0 %v579
        %795 = vmatmul.mubr.bf16.gmra.mrb[0].mxu0 %v578
        %v796 = vpop.f32.mrb[0].mxu0
        %v797 = vadd.f32 0.0, %v796
        %v798 = vpop.f32.mrb[0].mxu0
        %v799 = vpop.f32.mrb[0].mxu0
        %v800 = vadd.f32 0.0, %v799
        %v801 = vpop.f32.mrb[0].mxu0
        %802 = vmatprep.mubr.bf16.mxu0 %v581
        %803 = vmatmul.mubr.bf16.gmra.mrb[0].mxu0 %v580
        %v804 = vpop.f32.mrb[0].mxu0
        %v805 = vadd.f32 0.0, %v804
        %v806 = vpop.f32.mrb[0].mxu0
        %v807 = vpop.f32.mrb[0].mxu0
        %v808 = vadd.f32 0.0, %v807
        %v809 = vpop.f32.mrb[0].mxu0
        %810 = vmatprep.mubr.bf16.mxu0 %v583
        %811 = vmatmul.mubr.bf16.gmra.mrb[0].mxu0 %v582
        %v812 = vpop.f32.mrb[0].mxu0
        %v813 = vadd.f32 0.0, %v812
        %v814 = vpop.f32.mrb[0].mxu0
        %v815 = vpop.f32.mrb[0].mxu0
        %v816 = vadd.f32 0.0, %v815
        %v817 = vpop.f32.mrb[0].mxu0
        %818 = vmatprep.mubr.bf16.mxu0 %v585
        %819 = vmatmul.mubr.bf16.gmra.mrb[0].mxu0 %v584
        %v820 = vpop.f32.mrb[0].mxu0
        %v821 = vadd.f32 0.0, %v820
        %v822 = vpop.f32.mrb[0].mxu0
        %v823 = vpop.f32.mrb[0].mxu0
        %v824 = vadd.f32 0.0, %v823
        %v825 = vpop.f32.mrb[0].mxu0
        %826 = vmatprep.mubr.bf16.mxu0 %v587
        %827 = vmatmul.mubr.bf16.gmra.mrb[0].mxu0 %v586
        %v828 = vpop.f32.mrb[0].mxu0
        %v829 = vadd.f32 0.0, %v828
        %v830 = vpop.f32.mrb[0].mxu0
        %v831 = vpop.f32.mrb[0].mxu0
        %v832 = vadd.f32 0.0, %v831
        %v833 = vpop.f32.mrb[0].mxu0
        %834 = vmatprep.mubr.bf16.mxu0 %v589
        %835 = vmatmul.mubr.bf16.gmra.mrb[0].mxu0 %v588
        %v836 = vpop.f32.mrb[0].mxu0
        %v837 = vadd.f32 0.0, %v836
        %v838 = vpop.f32.mrb[0].mxu0
        %v839 = vpop.f32.mrb[0].mxu0
        %v840 = vadd.f32 0.0, %v839
        %v841 = vpop.f32.mrb[0].mxu0
        %842 = vmatprep.mubr.bf16.mxu0 %v591
        %843 = vmatmul.mubr.bf16.gmra.mrb[0].mxu0 %v590
        %v844 = vpop.f32.mrb[0].mxu0
        %v845 = vadd.f32 0.0, %v844
        %v846 = vpop.f32.mrb[0].mxu0
        %v847 = vpop.f32.mrb[0].mxu0
        %v848 = vadd.f32 0.0, %v847
        %v849 = vpop.f32.mrb[0].mxu0
        %850 = vmatprep.mubr.bf16.mxu0 %v593
        %851 = vmatmul.mubr.bf16.gmra.mrb[0].mxu0 %v592
        %v852 = vpop.f32.mrb[0].mxu0
        %v853 = vadd.f32 0.0, %v852
        %v854 = vpop.f32.mrb[0].mxu0
        %v855 = vpop.f32.mrb[0].mxu0
        %v856 = vadd.f32 0.0, %v855
        %v857 = vpop.f32.mrb[0].mxu0
        %858 = vmatprep.mubr.bf16.mxu0 %v595
        %859 = vmatmul.mubr.bf16.gmra.mrb[0].mxu0 %v594
        %v860 = vpop.f32.mrb[0].mxu0
        %v861 = vadd.f32 0.0, %v860
        %v862 = vpop.f32.mrb[0].mxu0
        %v863 = vpop.f32.mrb[0].mxu0
        %v864 = vadd.f32 0.0, %v863
        %v865 = vpop.f32.mrb[0].mxu0
        %866 = vmatprep.mubr.bf16.mxu0 %v597
        %867 = vmatmul.mubr.bf16.gmra.mrb[0].mxu0 %v596
        %v868 = vpop.f32.mrb[0].mxu0
        %v869 = vadd.f32 0.0, %v868
        %v870 = vpop.f32.mrb[0].mxu0
        %v871 = vpop.f32.mrb[0].mxu0
        %v872 = vadd.f32 0.0, %v871
        %v873 = vpop.f32.mrb[0].mxu0
        %874 = vmatprep.mubr.bf16.mxu0 %v599
        %875 = vmatmul.mubr.bf16.gmra.mrb[0].mxu0 %v598
        %v876 = vpop.f32.mrb[0].mxu0
        %v877 = vadd.f32 0.0, %v876
        %v878 = vpop.f32.mrb[0].mxu0
        %v879 = vpop.f32.mrb[0].mxu0
        %v880 = vadd.f32 0.0, %v879
        %v881 = vpop.f32.mrb[0].mxu0
        %882 = vmatprep.mubr.bf16.mxu0 %v601
        %883 = vmatmul.mubr.bf16.gmra.mrb[0].mxu0 %v600
        %v884 = vpop.f32.mrb[0].mxu0
        %v885 = vadd.f32 0.0, %v884
        %v886 = vpop.f32.mrb[0].mxu0
        %v887 = vpop.f32.mrb[0].mxu0
        %v888 = vadd.f32 0.0, %v887
        %v889 = vpop.f32.mrb[0].mxu0
        %890 = vdwg.mxu0
        %v891 = vpack.c.bf16 %v768, %v765
        %v892 = vpack.c.bf16 %v776, %v773
        %v893 = vpack.c.bf16 %v784, %v781
        %v894 = vpack.c.bf16 %v792, %v789
        %v895 = vpack.c.bf16 %v800, %v797
        %v896 = vpack.c.bf16 %v808, %v805
        %v897 = vpack.c.bf16 %v816, %v813
        %v898 = vpack.c.bf16 %v824, %v821
        %v899 = vpack.c.bf16 %v832, %v829
        %v900 = vpack.c.bf16 %v840, %v837
        %v901 = vpack.c.bf16 %v848, %v845
        %v902 = vpack.c.bf16 %v856, %v853
        %v903 = vpack.c.bf16 %v864, %v861
        %v904 = vpack.c.bf16 %v872, %v869
        %v905 = vpack.c.bf16 %v880, %v877
        %v906 = vpack.c.bf16 %v888, %v885
        %v907 = vld [vmem:[#allocation8] sm:$0xf]
        %v908 = vld [vmem:[#allocation8 + $0x4] sm:$0xf]
        %v909 = vld [vmem:[#allocation8 + $0x8] sm:$0xf]
        %v910 = vld [vmem:[#allocation8 + $0xc] sm:$0xf]
        %v911 = vld [vmem:[#allocation8 + $0x10] sm:$0xf]
        %v912 = vld [vmem:[#allocation8 + $0x14] sm:$0xf]
        %v913 = vld [vmem:[#allocation8 + $0x18] sm:$0xf]
        %v914 = vld [vmem:[#allocation8 + $0x1c] sm:$0xf]
        %v915 = vld [vmem:[#allocation8 + $0x20] sm:$0xf]
        %v916 = vld [vmem:[#allocation8 + $0x24] sm:$0xf]
        %v917 = vld [vmem:[#allocation8 + $0x28] sm:$0xf]
        %v918 = vld [vmem:[#allocation8 + $0x2c] sm:$0xf]
        %v919 = vld [vmem:[#allocation8 + $0x30] sm:$0xf]
        %v920 = vld [vmem:[#allocation8 + $0x34] sm:$0xf]
        %v921 = vld [vmem:[#allocation8 + $0x38] sm:$0xf]
        %v922 = vld [vmem:[#allocation8 + $0x3c] sm:$0xf]
        %v923 = vld [vmem:[%s4] sm:$0x1]
        %v925 = vlaneseq
        %v926 = vshrl.u32 %v925, 7
        %v927 = vsub.s32 0, %v926
        %v928 = vrot.slane %v923, %v927
        %v946 = vunpack.c.l.b16 %v907
        %v947 = vunpack.c.l.b16 %v908
        %v948 = vunpack.c.l.b16 %v909
        %v949 = vunpack.c.l.b16 %v910
        %v950 = vunpack.c.l.b16 %v911
        %v951 = vunpack.c.l.b16 %v912
        %v952 = vunpack.c.l.b16 %v913
        %v953 = vunpack.c.l.b16 %v914
        %v954 = vunpack.c.l.b16 %v915
        %v955 = vunpack.c.l.b16 %v916
        %v956 = vunpack.c.l.b16 %v917
        %v957 = vunpack.c.l.b16 %v918
        %v958 = vunpack.c.l.b16 %v919
        %v959 = vunpack.c.l.b16 %v920
        %v960 = vunpack.c.l.b16 %v921
        %v961 = vunpack.c.l.b16 %v922
        %v962 = vpack.c.b16 %v947, %v946
        %v963 = vpack.c.b16 %v949, %v948
        %v964 = vpack.c.b16 %v951, %v950
        %v965 = vpack.c.b16 %v953, %v952
        %v966 = vpack.c.b16 %v955, %v954
        %v967 = vpack.c.b16 %v957, %v956
        %v968 = vpack.c.b16 %v959, %v958
        %v969 = vpack.c.b16 %v961, %v960
        %978 = vmatprep.subr.bf16.mxu0 0
        %979 = vmatpush1.bf16.msra.mxu0 %v962
        %980 = vmatprep.subr.bf16.mxu0 0
        %981 = vmatpush1.bf16.msra.mxu0 %v963
        %982 = vmatprep.subr.bf16.mxu0 0
        %983 = vmatpush1.bf16.msra.mxu0 %v964
        %984 = vmatprep.subr.bf16.mxu0 0
        %985 = vmatpush1.bf16.msra.mxu0 %v965
        %986 = vmatprep.subr.bf16.mxu0 0
        %987 = vmatpush1.bf16.msra.mxu0 %v966
        %988 = vmatprep.subr.bf16.mxu0 0
        %989 = vmatpush1.bf16.msra.mxu0 %v967
        %990 = vmatprep.subr.bf16.mxu0 0
        %991 = vmatpush1.bf16.msra.mxu0 %v968
        %992 = vmatprep.subr.bf16.mxu0 0
        %993 = vmatpush1.bf16.msra.mxu0 %v969
        %994 = vmatprep.subr.bf16.mxu0 0
        %995 = vmatpush1.bf16.msra.mxu0 0
        %996 = vmatprep.subr.bf16.mxu0 0
        %997 = vmatpush1.bf16.msra.mxu0 0
        %998 = vmatprep.subr.bf16.mxu0 0
        %999 = vmatpush1.bf16.msra.mxu0 0
        %1000 = vmatprep.subr.bf16.mxu0 0
        %1001 = vmatpush1.bf16.msra.mxu0 0
        %1002 = vmatprep.subr.bf16.mxu0 0
        %1003 = vmatpush1.bf16.msra.mxu0 0
        %1004 = vmatprep.subr.bf16.mxu0 0
        %1005 = vmatpush1.bf16.msra.mxu0 0
        %1006 = vmatprep.subr.bf16.mxu0 0
        %1007 = vmatpush1.bf16.msra.mxu0 0
        %1008 = vmatprep.subr.bf16.mxu0 0
        %1009 = vmatpush1.bf16.msra.mxu0 0
        %1010 = vmatprep.mubr.bf16.mxu0 0
        %1011 = vmatmul.mubr.bf16.gmra.mrb[0].mxu0 %v891
        %v1012 = vpop.f32.mrb[0].mxu0
        %v1013 = vadd.f32 %v928, %v1012
        %v1014 = vpop.f32.mrb[0].mxu0
        %v1015 = vpop.f32.mrb[0].mxu0
        %v1016 = vadd.f32 %v928, %v1015
        %v1017 = vpop.f32.mrb[0].mxu0
        %1018 = vmatprep.mubr.bf16.mxu0 0
        %1019 = vmatmul.mubr.bf16.gmra.mrb[0].mxu0 %v892
        %v1020 = vpop.f32.mrb[0].mxu0
        %v1021 = vadd.f32 %v928, %v1020
        %v1022 = vpop.f32.mrb[0].mxu0
        %v1023 = vpop.f32.mrb[0].mxu0
        %v1024 = vadd.f32 %v928, %v1023
        %v1025 = vpop.f32.mrb[0].mxu0
        %1026 = vmatprep.mubr.bf16.mxu0 0
        %1027 = vmatmul.mubr.bf16.gmra.mrb[0].mxu0 %v893
        %v1028 = vpop.f32.mrb[0].mxu0
        %v1029 = vadd.f32 %v928, %v1028
        %v1030 = vpop.f32.mrb[0].mxu0
        %v1031 = vpop.f32.mrb[0].mxu0
        %v1032 = vadd.f32 %v928, %v1031
        %v1033 = vpop.f32.mrb[0].mxu0
        %1034 = vmatprep.mubr.bf16.mxu0 0
        %1035 = vmatmul.mubr.bf16.gmra.mrb[0].mxu0 %v894
        %v1036 = vpop.f32.mrb[0].mxu0
        %v1037 = vadd.f32 %v928, %v1036
        %v1038 = vpop.f32.mrb[0].mxu0
        %v1039 = vpop.f32.mrb[0].mxu0
        %v1040 = vadd.f32 %v928, %v1039
        %v1041 = vpop.f32.mrb[0].mxu0
        %1042 = vmatprep.mubr.bf16.mxu0 0
        %1043 = vmatmul.mubr.bf16.gmra.mrb[0].mxu0 %v895
        %v1044 = vpop.f32.mrb[0].mxu0
        %v1045 = vadd.f32 %v928, %v1044
        %v1046 = vpop.f32.mrb[0].mxu0
        %v1047 = vpop.f32.mrb[0].mxu0
        %v1048 = vadd.f32 %v928, %v1047
        %v1049 = vpop.f32.mrb[0].mxu0
        %1050 = vmatprep.mubr.bf16.mxu0 0
        %1051 = vmatmul.mubr.bf16.gmra.mrb[0].mxu0 %v896
        %v1052 = vpop.f32.mrb[0].mxu0
        %v1053 = vadd.f32 %v928, %v1052
        %v1054 = vpop.f32.mrb[0].mxu0
        %v1055 = vpop.f32.mrb[0].mxu0
        %v1056 = vadd.f32 %v928, %v1055
        %v1057 = vpop.f32.mrb[0].mxu0
        %1058 = vmatprep.mubr.bf16.mxu0 0
        %1059 = vmatmul.mubr.bf16.gmra.mrb[0].mxu0 %v897
        %v1060 = vpop.f32.mrb[0].mxu0
        %v1061 = vadd.f32 %v928, %v1060
        %v1062 = vpop.f32.mrb[0].mxu0
        %v1063 = vpop.f32.mrb[0].mxu0
        %v1064 = vadd.f32 %v928, %v1063
        %v1065 = vpop.f32.mrb[0].mxu0
        %1066 = vmatprep.mubr.bf16.mxu0 0
        %1067 = vmatmul.mubr.bf16.gmra.mrb[0].mxu0 %v898
        %v1068 = vpop.f32.mrb[0].mxu0
        %v1069 = vadd.f32 %v928, %v1068
        %v1070 = vpop.f32.mrb[0].mxu0
        %v1071 = vpop.f32.mrb[0].mxu0
        %v1072 = vadd.f32 %v928, %v1071
        %v1073 = vpop.f32.mrb[0].mxu0
        %1074 = vmatprep.mubr.bf16.mxu0 0
        %1075 = vmatmul.mubr.bf16.gmra.mrb[0].mxu0 %v899
        %v1076 = vpop.f32.mrb[0].mxu0
        %v1077 = vadd.f32 %v928, %v1076
        %v1078 = vpop.f32.mrb[0].mxu0
        %v1079 = vpop.f32.mrb[0].mxu0
        %v1080 = vadd.f32 %v928, %v1079
        %v1081 = vpop.f32.mrb[0].mxu0
        %1082 = vmatprep.mubr.bf16.mxu0 0
        %1083 = vmatmul.mubr.bf16.gmra.mrb[0].mxu0 %v900
        %v1084 = vpop.f32.mrb[0].mxu0
        %v1085 = vadd.f32 %v928, %v1084
        %v1086 = vpop.f32.mrb[0].mxu0
        %v1087 = vpop.f32.mrb[0].mxu0
        %v1088 = vadd.f32 %v928, %v1087
        %v1089 = vpop.f32.mrb[0].mxu0
        %1090 = vmatprep.mubr.bf16.mxu0 0
        %1091 = vmatmul.mubr.bf16.gmra.mrb[0].mxu0 %v901
        %v1092 = vpop.f32.mrb[0].mxu0
        %v1093 = vadd.f32 %v928, %v1092
        %v1094 = vpop.f32.mrb[0].mxu0
        %v1095 = vpop.f32.mrb[0].mxu0
        %v1096 = vadd.f32 %v928, %v1095
        %v1097 = vpop.f32.mrb[0].mxu0
        %1098 = vmatprep.mubr.bf16.mxu0 0
        %1099 = vmatmul.mubr.bf16.gmra.mrb[0].mxu0 %v902
        %v1100 = vpop.f32.mrb[0].mxu0
        %v1101 = vadd.f32 %v928, %v1100
        %v1102 = vpop.f32.mrb[0].mxu0
        %v1103 = vpop.f32.mrb[0].mxu0
        %v1104 = vadd.f32 %v928, %v1103
        %v1105 = vpop.f32.mrb[0].mxu0
        %1106 = vmatprep.mubr.bf16.mxu0 0
        %1107 = vmatmul.mubr.bf16.gmra.mrb[0].mxu0 %v903
        %v1108 = vpop.f32.mrb[0].mxu0
        %v1109 = vadd.f32 %v928, %v1108
        %v1110 = vpop.f32.mrb[0].mxu0
        %v1111 = vpop.f32.mrb[0].mxu0
        %v1112 = vadd.f32 %v928, %v1111
        %v1113 = vpop.f32.mrb[0].mxu0
        %1114 = vmatprep.mubr.bf16.mxu0 0
        %1115 = vmatmul.mubr.bf16.gmra.mrb[0].mxu0 %v904
        %v1116 = vpop.f32.mrb[0].mxu0
        %v1117 = vadd.f32 %v928, %v1116
        %v1118 = vpop.f32.mrb[0].mxu0
        %v1119 = vpop.f32.mrb[0].mxu0
        %v1120 = vadd.f32 %v928, %v1119
        %v1121 = vpop.f32.mrb[0].mxu0
        %1122 = vmatprep.mubr.bf16.mxu0 0
        %1123 = vmatmul.mubr.bf16.gmra.mrb[0].mxu0 %v905
        %v1124 = vpop.f32.mrb[0].mxu0
        %v1125 = vadd.f32 %v928, %v1124
        %v1126 = vpop.f32.mrb[0].mxu0
        %v1127 = vpop.f32.mrb[0].mxu0
        %v1128 = vadd.f32 %v928, %v1127
        %v1129 = vpop.f32.mrb[0].mxu0
        %1130 = vmatprep.mubr.bf16.mxu0 0
        %1131 = vmatmul.mubr.bf16.gmra.mrb[0].mxu0 %v906
        %v1132 = vpop.f32.mrb[0].mxu0
        %v1133 = vadd.f32 %v928, %v1132
        %v1134 = vpop.f32.mrb[0].mxu0
        %v1135 = vpop.f32.mrb[0].mxu0
        %v1136 = vadd.f32 %v928, %v1135
        %v1137 = vpop.f32.mrb[0].mxu0
        %1138 = vdwg.mxu0
        %v1139 = vmax.f32 %v1013, 0.0
        %v1140 = vmax.f32 %v1016, 0.0
        %v1141 = vmax.f32 %v1021, 0.0
        %v1142 = vmax.f32 %v1024, 0.0
        %v1143 = vmax.f32 %v1029, 0.0
        %v1144 = vmax.f32 %v1032, 0.0
        %v1145 = vmax.f32 %v1037, 0.0
        %v1146 = vmax.f32 %v1040, 0.0
        %v1147 = vmax.f32 %v1045, 0.0
        %v1148 = vmax.f32 %v1048, 0.0
        %v1149 = vmax.f32 %v1053, 0.0
        %v1150 = vmax.f32 %v1056, 0.0
        %v1151 = vmax.f32 %v1061, 0.0
        %v1152 = vmax.f32 %v1064, 0.0
        %v1153 = vmax.f32 %v1069, 0.0
        %v1154 = vmax.f32 %v1072, 0.0
        %v1155 = vmax.f32 %v1077, 0.0
        %v1156 = vmax.f32 %v1080, 0.0
        %v1157 = vmax.f32 %v1085, 0.0
        %v1158 = vmax.f32 %v1088, 0.0
        %v1159 = vmax.f32 %v1093, 0.0
        %v1160 = vmax.f32 %v1096, 0.0
        %v1161 = vmax.f32 %v1101, 0.0
        %v1162 = vmax.f32 %v1104, 0.0
        %v1163 = vmax.f32 %v1109, 0.0
        %v1164 = vmax.f32 %v1112, 0.0
        %v1165 = vmax.f32 %v1117, 0.0
        %v1166 = vmax.f32 %v1120, 0.0
        %v1167 = vmax.f32 %v1125, 0.0
        %v1168 = vmax.f32 %v1128, 0.0
        %v1169 = vmax.f32 %v1133, 0.0
        %v1170 = vmax.f32 %v1136, 0.0
        %v1171 = vpack.c.bf16 %v1140, %v1139
        %v1172 = vpack.c.bf16 %v1142, %v1141
        %v1173 = vpack.c.bf16 %v1144, %v1143
        %v1174 = vpack.c.bf16 %v1146, %v1145
        %v1175 = vpack.c.bf16 %v1148, %v1147
        %v1176 = vpack.c.bf16 %v1150, %v1149
        %v1177 = vpack.c.bf16 %v1152, %v1151
        %v1178 = vpack.c.bf16 %v1154, %v1153
        %v1179 = vpack.c.bf16 %v1156, %v1155
        %v1180 = vpack.c.bf16 %v1158, %v1157
        %v1181 = vpack.c.bf16 %v1160, %v1159
        %v1182 = vpack.c.bf16 %v1162, %v1161
        %v1183 = vpack.c.bf16 %v1164, %v1163
        %v1184 = vpack.c.bf16 %v1166, %v1165
        %v1185 = vpack.c.bf16 %v1168, %v1167
        %v1186 = vpack.c.bf16 %v1170, %v1169
        %1187 = vmatprep.subr.bf16.mxu0 0
        %1188 = vmatpush1.bf16.msra.mxu0 %v1171
        %1189 = vmatprep.subr.bf16.mxu0 0
        %1190 = vmatpush1.bf16.msra.mxu0 %v1172
        %1191 = vmatprep.subr.bf16.mxu0 0
        %1192 = vmatpush1.bf16.msra.mxu0 %v1173
        %1193 = vmatprep.subr.bf16.mxu0 0
        %1194 = vmatpush1.bf16.msra.mxu0 %v1174
        %1195 = vmatprep.subr.bf16.mxu0 0
        %1196 = vmatpush1.bf16.msra.mxu0 %v1175
        %1197 = vmatprep.subr.bf16.mxu0 0
        %1198 = vmatpush1.bf16.msra.mxu0 %v1176
        %1199 = vmatprep.subr.bf16.mxu0 0
        %1200 = vmatpush1.bf16.msra.mxu0 %v1177
        %1201 = vmatprep.subr.bf16.mxu0 0
        %1202 = vmatpush1.bf16.msra.mxu0 %v1178
        %1203 = vmatprep.subr.bf16.mxu0 0
        %1204 = vmatpush1.bf16.msra.mxu0 %v1179
        %1205 = vmatprep.subr.bf16.mxu0 0
        %1206 = vmatpush1.bf16.msra.mxu0 %v1180
        %1207 = vmatprep.subr.bf16.mxu0 0
        %1208 = vmatpush1.bf16.msra.mxu0 %v1181
        %1209 = vmatprep.subr.bf16.mxu0 0
        %1210 = vmatpush1.bf16.msra.mxu0 %v1182
        %1211 = vmatprep.subr.bf16.mxu0 0
        %1212 = vmatpush1.bf16.msra.mxu0 %v1183
        %1213 = vmatprep.subr.bf16.mxu0 0
        %1214 = vmatpush1.bf16.msra.mxu0 %v1184
        %1215 = vmatprep.subr.bf16.mxu0 0
        %1216 = vmatpush1.bf16.msra.mxu0 %v1185
        %1217 = vmatprep.subr.bf16.mxu0 0
        %1218 = vmatpush1.bf16.msra.mxu0 %v1186
        %1219 = vmatprep.mubr.bf16.mxu0 %v571
        %1220 = vmatmul.mubr.bf16.gmra.mrb[0].mxu0 %v570
        %v1221 = vpop.f32.mrb[0].mxu0
        %v1222 = vadd.f32 0.0, %v1221
        %v1223 = vpop.f32.mrb[0].mxu0
        %v1224 = vpop.f32.mrb[0].mxu0
        %v1225 = vadd.f32 0.0, %v1224
        %v1226 = vpop.f32.mrb[0].mxu0
        %1227 = vmatprep.mubr.bf16.mxu0 %v573
        %1228 = vmatmul.mubr.bf16.gmra.mrb[0].mxu0 %v572
        %v1229 = vpop.f32.mrb[0].mxu0
        %v1230 = vadd.f32 0.0, %v1229
        %v1231 = vpop.f32.mrb[0].mxu0
        %v1232 = vpop.f32.mrb[0].mxu0
        %v1233 = vadd.f32 0.0, %v1232
        %v1234 = vpop.f32.mrb[0].mxu0
        %1235 = vmatprep.mubr.bf16.mxu0 %v575
        %1236 = vmatmul.mubr.bf16.gmra.mrb[0].mxu0 %v574
        %v1237 = vpop.f32.mrb[0].mxu0
        %v1238 = vadd.f32 0.0, %v1237
        %v1239 = vpop.f32.mrb[0].mxu0
        %v1240 = vpop.f32.mrb[0].mxu0
        %v1241 = vadd.f32 0.0, %v1240
        %v1242 = vpop.f32.mrb[0].mxu0
        %1243 = vmatprep.mubr.bf16.mxu0 %v577
        %1244 = vmatmul.mubr.bf16.gmra.mrb[0].mxu0 %v576
        %v1245 = vpop.f32.mrb[0].mxu0
        %v1246 = vadd.f32 0.0, %v1245
        %v1247 = vpop.f32.mrb[0].mxu0
        %v1248 = vpop.f32.mrb[0].mxu0
        %v1249 = vadd.f32 0.0, %v1248
        %v1250 = vpop.f32.mrb[0].mxu0
        %1251 = vmatprep.mubr.bf16.mxu0 %v579
        %1252 = vmatmul.mubr.bf16.gmra.mrb[0].mxu0 %v578
        %v1253 = vpop.f32.mrb[0].mxu0
        %v1254 = vadd.f32 0.0, %v1253
        %v1255 = vpop.f32.mrb[0].mxu0
        %v1256 = vpop.f32.mrb[0].mxu0
        %v1257 = vadd.f32 0.0, %v1256
        %v1258 = vpop.f32.mrb[0].mxu0
        %1259 = vmatprep.mubr.bf16.mxu0 %v581
        %1260 = vmatmul.mubr.bf16.gmra.mrb[0].mxu0 %v580
        %v1261 = vpop.f32.mrb[0].mxu0
        %v1262 = vadd.f32 0.0, %v1261
        %v1263 = vpop.f32.mrb[0].mxu0
        %v1264 = vpop.f32.mrb[0].mxu0
        %v1265 = vadd.f32 0.0, %v1264
        %v1266 = vpop.f32.mrb[0].mxu0
        %1267 = vmatprep.mubr.bf16.mxu0 %v583
        %1268 = vmatmul.mubr.bf16.gmra.mrb[0].mxu0 %v582
        %v1269 = vpop.f32.mrb[0].mxu0
        %v1270 = vadd.f32 0.0, %v1269
        %v1271 = vpop.f32.mrb[0].mxu0
        %v1272 = vpop.f32.mrb[0].mxu0
        %v1273 = vadd.f32 0.0, %v1272
        %v1274 = vpop.f32.mrb[0].mxu0
        %1275 = vmatprep.mubr.bf16.mxu0 %v585
        %1276 = vmatmul.mubr.bf16.gmra.mrb[0].mxu0 %v584
        %v1277 = vpop.f32.mrb[0].mxu0
        %v1278 = vadd.f32 0.0, %v1277
        %v1279 = vpop.f32.mrb[0].mxu0
        %v1280 = vpop.f32.mrb[0].mxu0
        %v1281 = vadd.f32 0.0, %v1280
        %v1282 = vpop.f32.mrb[0].mxu0
        %1283 = vmatprep.mubr.bf16.mxu0 %v587
        %1284 = vmatmul.mubr.bf16.gmra.mrb[0].mxu0 %v586
        %v1285 = vpop.f32.mrb[0].mxu0
        %v1286 = vadd.f32 0.0, %v1285
        %v1287 = vpop.f32.mrb[0].mxu0
        %v1288 = vpop.f32.mrb[0].mxu0
        %v1289 = vadd.f32 0.0, %v1288
        %v1290 = vpop.f32.mrb[0].mxu0
        %1291 = vmatprep.mubr.bf16.mxu0 %v589
        %1292 = vmatmul.mubr.bf16.gmra.mrb[0].mxu0 %v588
        %v1293 = vpop.f32.mrb[0].mxu0
        %v1294 = vadd.f32 0.0, %v1293
        %v1295 = vpop.f32.mrb[0].mxu0
        %v1296 = vpop.f32.mrb[0].mxu0
        %v1297 = vadd.f32 0.0, %v1296
        %v1298 = vpop.f32.mrb[0].mxu0
        %1299 = vmatprep.mubr.bf16.mxu0 %v591
        %1300 = vmatmul.mubr.bf16.gmra.mrb[0].mxu0 %v590
        %v1301 = vpop.f32.mrb[0].mxu0
        %v1302 = vadd.f32 0.0, %v1301
        %v1303 = vpop.f32.mrb[0].mxu0
        %v1304 = vpop.f32.mrb[0].mxu0
        %v1305 = vadd.f32 0.0, %v1304
        %v1306 = vpop.f32.mrb[0].mxu0
        %1307 = vmatprep.mubr.bf16.mxu0 %v593
        %1308 = vmatmul.mubr.bf16.gmra.mrb[0].mxu0 %v592
        %v1309 = vpop.f32.mrb[0].mxu0
        %v1310 = vadd.f32 0.0, %v1309
        %v1311 = vpop.f32.mrb[0].mxu0
        %v1312 = vpop.f32.mrb[0].mxu0
        %v1313 = vadd.f32 0.0, %v1312
        %v1314 = vpop.f32.mrb[0].mxu0
        %1315 = vmatprep.mubr.bf16.mxu0 %v595
        %1316 = vmatmul.mubr.bf16.gmra.mrb[0].mxu0 %v594
        %v1317 = vpop.f32.mrb[0].mxu0
        %v1318 = vadd.f32 0.0, %v1317
        %v1319 = vpop.f32.mrb[0].mxu0
        %v1320 = vpop.f32.mrb[0].mxu0
        %v1321 = vadd.f32 0.0, %v1320
        %v1322 = vpop.f32.mrb[0].mxu0
        %1323 = vmatprep.mubr.bf16.mxu0 %v597
        %1324 = vmatmul.mubr.bf16.gmra.mrb[0].mxu0 %v596
        %v1325 = vpop.f32.mrb[0].mxu0
        %v1326 = vadd.f32 0.0, %v1325
        %v1327 = vpop.f32.mrb[0].mxu0
        %v1328 = vpop.f32.mrb[0].mxu0
        %v1329 = vadd.f32 0.0, %v1328
        %v1330 = vpop.f32.mrb[0].mxu0
        %1331 = vmatprep.mubr.bf16.mxu0 %v599
        %1332 = vmatmul.mubr.bf16.gmra.mrb[0].mxu0 %v598
        %v1333 = vpop.f32.mrb[0].mxu0
        %v1334 = vadd.f32 0.0, %v1333
        %v1335 = vpop.f32.mrb[0].mxu0
        %v1336 = vpop.f32.mrb[0].mxu0
        %v1337 = vadd.f32 0.0, %v1336
        %v1338 = vpop.f32.mrb[0].mxu0
        %1339 = vmatprep.mubr.bf16.mxu0 %v601
        %1340 = vmatmul.mubr.bf16.gmra.mrb[0].mxu0 %v600
        %v1341 = vpop.f32.mrb[0].mxu0
        %v1342 = vadd.f32 0.0, %v1341
        %v1343 = vpop.f32.mrb[0].mxu0
        %v1344 = vpop.f32.mrb[0].mxu0
        %v1345 = vadd.f32 0.0, %v1344
        %v1346 = vpop.f32.mrb[0].mxu0
        %1347 = vdwg.mxu0
        %v1348 = vpack.c.bf16 %v1225, %v1222
        %v1349 = vpack.c.bf16 %v1233, %v1230
        %v1350 = vpack.c.bf16 %v1241, %v1238
        %v1351 = vpack.c.bf16 %v1249, %v1246
        %v1352 = vpack.c.bf16 %v1257, %v1254
        %v1353 = vpack.c.bf16 %v1265, %v1262
        %v1354 = vpack.c.bf16 %v1273, %v1270
        %v1355 = vpack.c.bf16 %v1281, %v1278
        %v1356 = vpack.c.bf16 %v1289, %v1286
        %v1357 = vpack.c.bf16 %v1297, %v1294
        %v1358 = vpack.c.bf16 %v1305, %v1302
        %v1359 = vpack.c.bf16 %v1313, %v1310
        %v1360 = vpack.c.bf16 %v1321, %v1318
        %v1361 = vpack.c.bf16 %v1329, %v1326
        %v1362 = vpack.c.bf16 %v1337, %v1334
        %v1363 = vpack.c.bf16 %v1345, %v1342
        %v1364 = vld [vmem:[#allocation10] sm:$0xf]
        %v1365 = vld [vmem:[#allocation10 + $0x4] sm:$0xf]
        %v1366 = vld [vmem:[#allocation10 + $0x8] sm:$0xf]
        %v1367 = vld [vmem:[#allocation10 + $0xc] sm:$0xf]
        %v1368 = vld [vmem:[#allocation10 + $0x10] sm:$0xf]
        %v1369 = vld [vmem:[#allocation10 + $0x14] sm:$0xf]
        %v1370 = vld [vmem:[#allocation10 + $0x18] sm:$0xf]
        %v1371 = vld [vmem:[#allocation10 + $0x1c] sm:$0xf]
        %v1372 = vld [vmem:[#allocation10 + $0x20] sm:$0xf]
        %v1373 = vld [vmem:[#allocation10 + $0x24] sm:$0xf]
        %v1374 = vld [vmem:[#allocation10 + $0x28] sm:$0xf]
        %v1375 = vld [vmem:[#allocation10 + $0x2c] sm:$0xf]
        %v1376 = vld [vmem:[#allocation10 + $0x30] sm:$0xf]
        %v1377 = vld [vmem:[#allocation10 + $0x34] sm:$0xf]
        %v1378 = vld [vmem:[#allocation10 + $0x38] sm:$0xf]
        %v1379 = vld [vmem:[#allocation10 + $0x3c] sm:$0xf]
        %v1380 = vld [vmem:[%s6] sm:$0x1]
        %v1382 = vlaneseq
        %v1383 = vshrl.u32 %v1382, 7
        %v1384 = vsub.s32 0, %v1383
        %v1385 = vrot.slane %v1380, %v1384
        %v1403 = vunpack.c.l.b16 %v1364
        %v1404 = vunpack.c.l.b16 %v1365
        %v1405 = vunpack.c.l.b16 %v1366
        %v1406 = vunpack.c.l.b16 %v1367
        %v1407 = vunpack.c.l.b16 %v1368
        %v1408 = vunpack.c.l.b16 %v1369
        %v1409 = vunpack.c.l.b16 %v1370
        %v1410 = vunpack.c.l.b16 %v1371
        %v1411 = vunpack.c.l.b16 %v1372
        %v1412 = vunpack.c.l.b16 %v1373
        %v1413 = vunpack.c.l.b16 %v1374
        %v1414 = vunpack.c.l.b16 %v1375
        %v1415 = vunpack.c.l.b16 %v1376
        %v1416 = vunpack.c.l.b16 %v1377
        %v1417 = vunpack.c.l.b16 %v1378
        %v1418 = vunpack.c.l.b16 %v1379
        %v1419 = vpack.c.b16 %v1404, %v1403
        %v1420 = vpack.c.b16 %v1406, %v1405
        %v1421 = vpack.c.b16 %v1408, %v1407
        %v1422 = vpack.c.b16 %v1410, %v1409
        %v1423 = vpack.c.b16 %v1412, %v1411
        %v1424 = vpack.c.b16 %v1414, %v1413
        %v1425 = vpack.c.b16 %v1416, %v1415
        %v1426 = vpack.c.b16 %v1418, %v1417
        %1435 = vmatprep.subr.bf16.mxu0 0
        %1436 = vmatpush1.bf16.msra.mxu0 %v1419
        %1437 = vmatprep.subr.bf16.mxu0 0
        %1438 = vmatpush1.bf16.msra.mxu0 %v1420
        %1439 = vmatprep.subr.bf16.mxu0 0
        %1440 = vmatpush1.bf16.msra.mxu0 %v1421
        %1441 = vmatprep.subr.bf16.mxu0 0
        %1442 = vmatpush1.bf16.msra.mxu0 %v1422
        %1443 = vmatprep.subr.bf16.mxu0 0
        %1444 = vmatpush1.bf16.msra.mxu0 %v1423
        %1445 = vmatprep.subr.bf16.mxu0 0
        %1446 = vmatpush1.bf16.msra.mxu0 %v1424
        %1447 = vmatprep.subr.bf16.mxu0 0
        %1448 = vmatpush1.bf16.msra.mxu0 %v1425
        %1449 = vmatprep.subr.bf16.mxu0 0
        %1450 = vmatpush1.bf16.msra.mxu0 %v1426
        %1451 = vmatprep.subr.bf16.mxu0 0
        %1452 = vmatpush1.bf16.msra.mxu0 0
        %1453 = vmatprep.subr.bf16.mxu0 0
        %1454 = vmatpush1.bf16.msra.mxu0 0
        %1455 = vmatprep.subr.bf16.mxu0 0
        %1456 = vmatpush1.bf16.msra.mxu0 0
        %1457 = vmatprep.subr.bf16.mxu0 0
        %1458 = vmatpush1.bf16.msra.mxu0 0
        %1459 = vmatprep.subr.bf16.mxu0 0
        %1460 = vmatpush1.bf16.msra.mxu0 0
        %1461 = vmatprep.subr.bf16.mxu0 0
        %1462 = vmatpush1.bf16.msra.mxu0 0
        %1463 = vmatprep.subr.bf16.mxu0 0
        %1464 = vmatpush1.bf16.msra.mxu0 0
        %1465 = vmatprep.subr.bf16.mxu0 0
        %1466 = vmatpush1.bf16.msra.mxu0 0
        %1467 = vmatprep.mubr.bf16.mxu0 0
        %1468 = vmatmul.mubr.bf16.gmra.mrb[0].mxu0 %v1348
        %v1469 = vpop.f32.mrb[0].mxu0
        %v1470 = vadd.f32 %v1385, %v1469
        %v1471 = vpop.f32.mrb[0].mxu0
        %v1472 = vpop.f32.mrb[0].mxu0
        %v1473 = vadd.f32 %v1385, %v1472
        %v1474 = vpop.f32.mrb[0].mxu0
        %1475 = vmatprep.mubr.bf16.mxu0 0
        %1476 = vmatmul.mubr.bf16.gmra.mrb[0].mxu0 %v1349
        %v1477 = vpop.f32.mrb[0].mxu0
        %v1478 = vadd.f32 %v1385, %v1477
        %v1479 = vpop.f32.mrb[0].mxu0
        %v1480 = vpop.f32.mrb[0].mxu0
        %v1481 = vadd.f32 %v1385, %v1480
        %v1482 = vpop.f32.mrb[0].mxu0
        %1483 = vmatprep.mubr.bf16.mxu0 0
        %1484 = vmatmul.mubr.bf16.gmra.mrb[0].mxu0 %v1350
        %v1485 = vpop.f32.mrb[0].mxu0
        %v1486 = vadd.f32 %v1385, %v1485
        %v1487 = vpop.f32.mrb[0].mxu0
        %v1488 = vpop.f32.mrb[0].mxu0
        %v1489 = vadd.f32 %v1385, %v1488
        %v1490 = vpop.f32.mrb[0].mxu0
        %1491 = vmatprep.mubr.bf16.mxu0 0
        %1492 = vmatmul.mubr.bf16.gmra.mrb[0].mxu0 %v1351
        %v1493 = vpop.f32.mrb[0].mxu0
        %v1494 = vadd.f32 %v1385, %v1493
        %v1495 = vpop.f32.mrb[0].mxu0
        %v1496 = vpop.f32.mrb[0].mxu0
        %v1497 = vadd.f32 %v1385, %v1496
        %v1498 = vpop.f32.mrb[0].mxu0
        %1499 = vmatprep.mubr.bf16.mxu0 0
        %1500 = vmatmul.mubr.bf16.gmra.mrb[0].mxu0 %v1352
        %v1501 = vpop.f32.mrb[0].mxu0
        %v1502 = vadd.f32 %v1385, %v1501
        %v1503 = vpop.f32.mrb[0].mxu0
        %v1504 = vpop.f32.mrb[0].mxu0
        %v1505 = vadd.f32 %v1385, %v1504
        %v1506 = vpop.f32.mrb[0].mxu0
        %1507 = vmatprep.mubr.bf16.mxu0 0
        %1508 = vmatmul.mubr.bf16.gmra.mrb[0].mxu0 %v1353
        %v1509 = vpop.f32.mrb[0].mxu0
        %v1510 = vadd.f32 %v1385, %v1509
        %v1511 = vpop.f32.mrb[0].mxu0
        %v1512 = vpop.f32.mrb[0].mxu0
        %v1513 = vadd.f32 %v1385, %v1512
        %v1514 = vpop.f32.mrb[0].mxu0
        %1515 = vmatprep.mubr.bf16.mxu0 0
        %1516 = vmatmul.mubr.bf16.gmra.mrb[0].mxu0 %v1354
        %v1517 = vpop.f32.mrb[0].mxu0
        %v1518 = vadd.f32 %v1385, %v1517
        %v1519 = vpop.f32.mrb[0].mxu0
        %v1520 = vpop.f32.mrb[0].mxu0
        %v1521 = vadd.f32 %v1385, %v1520
        %v1522 = vpop.f32.mrb[0].mxu0
        %1523 = vmatprep.mubr.bf16.mxu0 0
        %1524 = vmatmul.mubr.bf16.gmra.mrb[0].mxu0 %v1355
        %v1525 = vpop.f32.mrb[0].mxu0
        %v1526 = vadd.f32 %v1385, %v1525
        %v1527 = vpop.f32.mrb[0].mxu0
        %v1528 = vpop.f32.mrb[0].mxu0
        %v1529 = vadd.f32 %v1385, %v1528
        %v1530 = vpop.f32.mrb[0].mxu0
        %1531 = vmatprep.mubr.bf16.mxu0 0
        %1532 = vmatmul.mubr.bf16.gmra.mrb[0].mxu0 %v1356
        %v1533 = vpop.f32.mrb[0].mxu0
        %v1534 = vadd.f32 %v1385, %v1533
        %v1535 = vpop.f32.mrb[0].mxu0
        %v1536 = vpop.f32.mrb[0].mxu0
        %v1537 = vadd.f32 %v1385, %v1536
        %v1538 = vpop.f32.mrb[0].mxu0
        %1539 = vmatprep.mubr.bf16.mxu0 0
        %1540 = vmatmul.mubr.bf16.gmra.mrb[0].mxu0 %v1357
        %v1541 = vpop.f32.mrb[0].mxu0
        %v1542 = vadd.f32 %v1385, %v1541
        %v1543 = vpop.f32.mrb[0].mxu0
        %v1544 = vpop.f32.mrb[0].mxu0
        %v1545 = vadd.f32 %v1385, %v1544
        %v1546 = vpop.f32.mrb[0].mxu0
        %1547 = vmatprep.mubr.bf16.mxu0 0
        %1548 = vmatmul.mubr.bf16.gmra.mrb[0].mxu0 %v1358
        %v1549 = vpop.f32.mrb[0].mxu0
        %v1550 = vadd.f32 %v1385, %v1549
        %v1551 = vpop.f32.mrb[0].mxu0
        %v1552 = vpop.f32.mrb[0].mxu0
        %v1553 = vadd.f32 %v1385, %v1552
        %v1554 = vpop.f32.mrb[0].mxu0
        %1555 = vmatprep.mubr.bf16.mxu0 0
        %1556 = vmatmul.mubr.bf16.gmra.mrb[0].mxu0 %v1359
        %v1557 = vpop.f32.mrb[0].mxu0
        %v1558 = vadd.f32 %v1385, %v1557
        %v1559 = vpop.f32.mrb[0].mxu0
        %v1560 = vpop.f32.mrb[0].mxu0
        %v1561 = vadd.f32 %v1385, %v1560
        %v1562 = vpop.f32.mrb[0].mxu0
        %1563 = vmatprep.mubr.bf16.mxu0 0
        %1564 = vmatmul.mubr.bf16.gmra.mrb[0].mxu0 %v1360
        %v1565 = vpop.f32.mrb[0].mxu0
        %v1566 = vadd.f32 %v1385, %v1565
        %v1567 = vpop.f32.mrb[0].mxu0
        %v1568 = vpop.f32.mrb[0].mxu0
        %v1569 = vadd.f32 %v1385, %v1568
        %v1570 = vpop.f32.mrb[0].mxu0
        %1571 = vmatprep.mubr.bf16.mxu0 0
        %1572 = vmatmul.mubr.bf16.gmra.mrb[0].mxu0 %v1361
        %v1573 = vpop.f32.mrb[0].mxu0
        %v1574 = vadd.f32 %v1385, %v1573
        %v1575 = vpop.f32.mrb[0].mxu0
        %v1576 = vpop.f32.mrb[0].mxu0
        %v1577 = vadd.f32 %v1385, %v1576
        %v1578 = vpop.f32.mrb[0].mxu0
        %1579 = vmatprep.mubr.bf16.mxu0 0
        %1580 = vmatmul.mubr.bf16.gmra.mrb[0].mxu0 %v1362
        %v1581 = vpop.f32.mrb[0].mxu0
        %v1582 = vadd.f32 %v1385, %v1581
        %v1583 = vpop.f32.mrb[0].mxu0
        %v1584 = vpop.f32.mrb[0].mxu0
        %v1585 = vadd.f32 %v1385, %v1584
        %v1586 = vpop.f32.mrb[0].mxu0
        %1587 = vmatprep.mubr.bf16.mxu0 0
        %1588 = vmatmul.mubr.bf16.gmra.mrb[0].mxu0 %v1363
        %v1589 = vpop.f32.mrb[0].mxu0
        %v1590 = vadd.f32 %v1385, %v1589
        %v1591 = vpop.f32.mrb[0].mxu0
        %v1592 = vpop.f32.mrb[0].mxu0
        %v1593 = vadd.f32 %v1385, %v1592
        %v1594 = vpop.f32.mrb[0].mxu0
        %1595 = vdwg.mxu0
        %v1596 = vmax.f32 %v1470, 0.0
        %v1597 = vmax.f32 %v1473, 0.0
        %v1598 = vmax.f32 %v1478, 0.0
        %v1599 = vmax.f32 %v1481, 0.0
        %v1600 = vmax.f32 %v1486, 0.0
        %v1601 = vmax.f32 %v1489, 0.0
        %v1602 = vmax.f32 %v1494, 0.0
        %v1603 = vmax.f32 %v1497, 0.0
        %v1604 = vmax.f32 %v1502, 0.0
        %v1605 = vmax.f32 %v1505, 0.0
        %v1606 = vmax.f32 %v1510, 0.0
        %v1607 = vmax.f32 %v1513, 0.0
        %v1608 = vmax.f32 %v1518, 0.0
        %v1609 = vmax.f32 %v1521, 0.0
        %v1610 = vmax.f32 %v1526, 0.0
        %v1611 = vmax.f32 %v1529, 0.0
        %v1612 = vmax.f32 %v1534, 0.0
        %v1613 = vmax.f32 %v1537, 0.0
        %v1614 = vmax.f32 %v1542, 0.0
        %v1615 = vmax.f32 %v1545, 0.0
        %v1616 = vmax.f32 %v1550, 0.0
        %v1617 = vmax.f32 %v1553, 0.0
        %v1618 = vmax.f32 %v1558, 0.0
        %v1619 = vmax.f32 %v1561, 0.0
        %v1620 = vmax.f32 %v1566, 0.0
        %v1621 = vmax.f32 %v1569, 0.0
        %v1622 = vmax.f32 %v1574, 0.0
        %v1623 = vmax.f32 %v1577, 0.0
        %v1624 = vmax.f32 %v1582, 0.0
        %v1625 = vmax.f32 %v1585, 0.0
        %v1626 = vmax.f32 %v1590, 0.0
        %v1627 = vmax.f32 %v1593, 0.0
        %v1628 = vld [vmem:[%s356] sm:$0xff]
        %v1629 = vld [vmem:[%s356 + $0x8] sm:$0xff]
        %v1630 = vld [vmem:[%s356 + $0x10] sm:$0xff]
        %v1631 = vld [vmem:[%s356 + $0x18] sm:$0xff]
        %1632 = vmatprep.subr.mxu0 0.0
        %1633 = vmatpush1.msra.mxu0 %v1596
        %1634 = vmatprep.subr.mxu0 0.0
        %1635 = vmatpush1.msra.mxu0 %v1597
        %1636 = vmatprep.subr.mxu0 0.0
        %1637 = vmatpush1.msra.mxu0 %v1598
        %1638 = vmatprep.subr.mxu0 0.0
        %1639 = vmatpush1.msra.mxu0 %v1599
        %1640 = vmatprep.subr.mxu0 0.0
        %1641 = vmatpush1.msra.mxu0 %v1600
        %1642 = vmatprep.subr.mxu0 0.0
        %1643 = vmatpush1.msra.mxu0 %v1601
        %1644 = vmatprep.subr.mxu0 0.0
        %1645 = vmatpush1.msra.mxu0 %v1602
        %1646 = vmatprep.subr.mxu0 0.0
        %1647 = vmatpush1.msra.mxu0 %v1603
        %1648 = vmatprep.subr.mxu0 0.0
        %1649 = vmatpush1.msra.mxu0 %v1604
        %1650 = vmatprep.subr.mxu0 0.0
        %1651 = vmatpush1.msra.mxu0 %v1605
        %1652 = vmatprep.subr.mxu0 0.0
        %1653 = vmatpush1.msra.mxu0 %v1606
        %1654 = vmatprep.subr.mxu0 0.0
        %1655 = vmatpush1.msra.mxu0 %v1607
        %1656 = vmatprep.subr.mxu0 0.0
        %1657 = vmatpush1.msra.mxu0 %v1608
        %1658 = vmatprep.subr.mxu0 0.0
        %1659 = vmatpush1.msra.mxu0 %v1609
        %1660 = vmatprep.subr.mxu0 0.0
        %1661 = vmatpush1.msra.mxu0 %v1610
        %1662 = vmatprep.subr.mxu0 0.0
        %1663 = vmatpush1.msra.mxu0 %v1611
        %1664 = vmatprep.subr.mxu0 0.0
        %1665 = vmatpush1.msra.mxu0 %v1612
        %1666 = vmatprep.subr.mxu0 0.0
        %1667 = vmatpush1.msra.mxu0 %v1613
        %1668 = vmatprep.subr.mxu0 0.0
        %1669 = vmatpush1.msra.mxu0 %v1614
        %1670 = vmatprep.subr.mxu0 0.0
        %1671 = vmatpush1.msra.mxu0 %v1615
        %1672 = vmatprep.subr.mxu0 0.0
        %1673 = vmatpush1.msra.mxu0 %v1616
        %1674 = vmatprep.subr.mxu0 0.0
        %1675 = vmatpush1.msra.mxu0 %v1617
        %1676 = vmatprep.subr.mxu0 0.0
        %1677 = vmatpush1.msra.mxu0 %v1618
        %1678 = vmatprep.subr.mxu0 0.0
        %1679 = vmatpush1.msra.mxu0 %v1619
        %1680 = vmatprep.subr.mxu0 0.0
        %1681 = vmatpush1.msra.mxu0 %v1620
        %1682 = vmatprep.subr.mxu0 0.0
        %1683 = vmatpush1.msra.mxu0 %v1621
        %1684 = vmatprep.subr.mxu0 0.0
        %1685 = vmatpush1.msra.mxu0 %v1622
        %1686 = vmatprep.subr.mxu0 0.0
        %1687 = vmatpush1.msra.mxu0 %v1623
        %1688 = vmatprep.subr.mxu0 0.0
        %1689 = vmatpush1.msra.mxu0 %v1624
        %1690 = vmatprep.subr.mxu0 0.0
        %1691 = vmatpush1.msra.mxu0 %v1625
        %1692 = vmatprep.subr.mxu0 0.0
        %1693 = vmatpush1.msra.mxu0 %v1626
        %1694 = vmatprep.subr.mxu0 0.0
        %1695 = vmatpush1.msra.mxu0 %v1627
        %1696 = vmatprep.mubr.f32.mxu0 %v1629
        %1697 = vmatmul.mubr.f32.gmra.mrb[0].mxu0 %v1628
        %v1698 = vpop.f32.mrb[0].mxu0
        %v1699 = vadd.f32 0.0, %v1698
        %v1700 = vpop.f32.mrb[0].mxu0
        %1701 = vmatprep.mubr.f32.mxu0 %v1631
        %1702 = vmatmul.mubr.f32.gmra.mrb[0].mxu0 %v1630
        %v1703 = vpop.f32.mrb[0].mxu0
        %v1704 = vadd.f32 0.0, %v1703
        %v1705 = vpop.f32.mrb[0].mxu0
        %1706 = vdwg.mxu0
        %1707 = vst [vmem:[%s404] sm:$0xff] %v1699
        %1708 = vst [vmem:[%s404 + $0x8] sm:$0xff] %v1704
        %s1709 = sand.u32 %s198, 1
        %s1710 = scalar_lea.sflag [#allocation4], %s1709
        %s1711 = sand.u32 %s198, 1
        %s1712 = smul.addr %s1711, 16
        %s1713 = scalar_lea.vmem [#allocation11], %s1712
        // Predicated region
        $region69: #{tpu_custom_call.1} parent=47 // pred_check
          %p1714 = pneg %p208
        $region70: #{tpu_custom_call.1} parent=47 // pred_check_branch
          %1716 = sbr.rel (%p1714) target = $region72
        $region71: #{tpu_custom_call.1} parent=47 // pred_region
          %s1717 = smul.u32 2, %s28
          %s1719 = ssub.s32 256, 256
          %1720 = vsyncadd %s1710, %s1719
          %s1721 = smul.addr %s1717, 128
          %s1722 = scalar_lea.hbm %s7, %s1721
          %s1723 = sshll.u32 %s1713, 4
          %s1724 = int_to_ptr.vmem [resolvable:$true] %s1723
          %1729 = dma.vmem_to_hbm [thread:$0]  %s1724, 256, %s1722, %s1710, 128, 128, 8
        $region72: #{tpu_custom_call.1} parent=47 // pred_fallthru
          _
      $region48: #{tpu_custom_call.1} parent=5 // pred_fallthru
        _
      %p1730 = scmp.le.s32.totalorder 2, %s23
      // Predicated region
      $region73: #{tpu_custom_call.1} parent=5 // pred_check
        %p1731 = pneg %p1730
      $region74: #{tpu_custom_call.1} parent=5 // pred_check_branch
        %1733 = sbr.rel (%p1731) target = $region76
      $region75: #{tpu_custom_call.1} parent=5 // pred_region
        %s1734 = ssub.s32 %s23, 2
        // Predicated region
        $region77: #{tpu_custom_call.1} parent=75 // pred_check
          %p1735 = pneg %p214
        $region78: #{tpu_custom_call.1} parent=75 // pred_check_branch
          %1737 = sbr.rel (%p1735) target = $region80
        $region79: #{tpu_custom_call.1} parent=75 // pred_region
          %s1738 = sand.u32 %s199, 1
          %s1739 = scalar_lea.sflag [#allocation4], %s1738
          %s1740 = sand.u32 %s199, 1
          %s1741 = smul.addr %s1740, 16
          %s1742 = scalar_lea.vmem [#allocation11], %s1741
          %1743 = dma.done %s1739, 256
        $region80: #{tpu_custom_call.1} parent=75 // pred_fallthru
          _
      $region76: #{tpu_custom_call.1} parent=5 // pred_fallthru
        _
    $region6: #{tpu_custom_call.1} parent=1 // loop_footer
      %s27 = sadd.s32 1, %s23
    $region7: #{tpu_custom_call.1} parent=1 // loop_footer_branch
      %22 = sbr.rel target = $region3
    $region8: #{tpu_custom_call.1} parent=1 // loop_exit
      _
    %1744 = vsyncpa [#allocation3], 1
    %s1745 = scalar_lea.sflag [#allocation3], 1
    %1746 = vsyncpa %s1745, 1
    %1747 = vsyncpa [#allocation6], 1
    %s1748 = scalar_lea.sflag [#allocation6], 1
    %1749 = vsyncpa %s1748, 1
    %1750 = vsyncpa [#allocation9], 1
    %1751 = vsyncpa [#allocation4], 1
    %s1752 = scalar_lea.sflag [#allocation4], 1
    %1753 = vsyncpa %s1752, 1

</llo_original>
